<compile_context>
chip_gen: v5e
topology: v5e:2x2
jax: 0.10.0
libtpu: 0.0.40
codegen_flags: <defaults>
</compile_context>

<pallas_src>
import functools

import jax
import jax.numpy as jnp
from jax.experimental import pallas as pl
from jax.experimental.pallas import tpu as pltpu  # noqa: F401  (TPU backend)


# -----------------------------------------------------------------------------
# Config (small, but structurally identical to BERT: emb -> L encoder layers ->
# pooler(dense + tanh) over the [CLS] token).
# -----------------------------------------------------------------------------
class Config:
    vocab_size = 100
    type_vocab_size = 2
    max_position_embeddings = 32
    hidden_size = 32
    num_heads = 2
    num_layers = 2
    intermediate_size = 64
    layer_norm_eps = 1e-12


# -----------------------------------------------------------------------------
# Fused whole-model Pallas kernel.  Single invocation, everything in VMEM.
# -----------------------------------------------------------------------------
def _bert_kernel(x_ref, mask_ref, emb_g_ref, emb_b_ref,
                 qkv_w_ref, qkv_b_ref, ao_w_ref, ao_b_ref,
                 ln1_g_ref, ln1_b_ref, i_w_ref, i_b_ref,
                 o_w_ref, o_b_ref, ln2_g_ref, ln2_b_ref,
                 pool_w_ref, pool_b_ref, out_ref,
                 *, num_heads, num_layers, eps):
    M, H = x_ref.shape                 # M = B * S  (batch folded into rows)
    B, _, S = mask_ref.shape
    dh = H // num_heads
    scale = 1.0 / float(dh) ** 0.5

    def layernorm(y, g, b):
        mean = jnp.mean(y, axis=-1, keepdims=True)
        var = jnp.mean(jnp.square(y - mean), axis=-1, keepdims=True)
        return (y - mean) * jax.lax.rsqrt(var + eps) * g + b

    x = x_ref[...].astype(jnp.float32)           # (M, H) f32 activations
    mask = mask_ref[...].astype(jnp.float32)     # (B, 1, S) additive mask
    x = layernorm(x, emb_g_ref[...], emb_b_ref[...])

    for l in range(num_layers):                  # static unroll (L = 2)
        # ---- fused QKV projection over all B*S rows (bf16 MXU feed) ---------
        qkv = (jnp.dot(x.astype(jnp.bfloat16), qkv_w_ref[l],
                       preferred_element_type=jnp.float32)
               + qkv_b_ref[l])                   # (M, 3H) f32
        qkv = qkv.reshape(B, S, 3 * H)           # leading-dim split only
        ao_w = ao_w_ref[l]                       # (H, H) bf16

        # ---- attention, batched over B in a single dot_general per head -----
        attn = jnp.zeros((M, H), jnp.float32)
        for h in range(num_heads):               # static unroll (nh = 2)
            qh = qkv[:, :, h * dh:(h + 1) * dh].astype(jnp.bfloat16)
            kh = qkv[:, :, H + h * dh:H + (h + 1) * dh].astype(jnp.bfloat16)
            vh = qkv[:, :, 2 * H + h * dh:
                     2 * H + (h + 1) * dh].astype(jnp.bfloat16)
            s = jnp.einsum('bqd,bkd->bqk', qh, kh,
                           preferred_element_type=jnp.float32)   # (B, S, S)
            s = s * scale + mask
            s = s - jnp.max(s, axis=-1, keepdims=True)
            p = jnp.exp(s)
            p = p / jnp.sum(p, axis=-1, keepdims=True)           # exact softmax
            ch = jnp.einsum('bqk,bkd->bqd', p.astype(jnp.bfloat16), vh,
                            preferred_element_type=jnp.float32)  # (B, S, dh)
            # head merge folded into the output projection
            attn = attn + jnp.dot(ch.reshape(M, dh).astype(jnp.bfloat16),
                                  ao_w[h * dh:(h + 1) * dh, :],
                                  preferred_element_type=jnp.float32)
        attn = attn + ao_b_ref[l]
        x = layernorm(attn + x, ln1_g_ref[l], ln1_b_ref[l])

        # ---- feed-forward with exact (erf) BERT GELU -------------------------
        inter = (jnp.dot(x.astype(jnp.bfloat16), i_w_ref[l],
                         preferred_element_type=jnp.float32)
                 + i_b_ref[l])                   # (M, I) f32
        inter = 0.5 * inter * (1.0 + jax.lax.erf(inter * 0.7071067811865476))
        out = (jnp.dot(inter.astype(jnp.bfloat16), o_w_ref[l],
                       preferred_element_type=jnp.float32)
               + o_b_ref[l])
        x = layernorm(out + x, ln2_g_ref[l], ln2_b_ref[l])

    # ---- pooler: dense + tanh over each batch's [CLS] token ------------------
    for b in range(B):                           # static unroll (B = 2)
        cls = x[b * S:b * S + 1, :]              # (1, H) — row slice only
        pooled = jnp.tanh(jnp.dot(cls.astype(jnp.bfloat16), pool_w_ref[...],
                                  preferred_element_type=jnp.float32)
                          + pool_b_ref[...])
        out_ref[b:b + 1, :] = pooled.astype(out_ref.dtype)


def fused_bert_forward(emb, ext_mask, params, cfg):
    B, S, H = emb.shape
    kernel = functools.partial(_bert_kernel,
                               num_heads=cfg.num_heads,
                               num_layers=cfg.num_layers,
                               eps=cfg.layer_norm_eps)
    # Single pallas_call invocation, no grid: every operand is one whole-array
    # VMEM block for the entire forward (weights loaded exactly once, no
    # double-buffering, no dimension_semantics needed).
    out = pl.pallas_call(
        kernel,
        out_shape=jax.ShapeDtypeStruct((B, H), jnp.float32),
    )(emb.reshape(B * S, H), ext_mask,
      params["emb_ln_g"], params["emb_ln_b"],
      params["qkv_w"], params["qkv_b"],
      params["ao_w"], params["ao_b"],
      params["ln1_g"], params["ln1_b"],
      params["i_w"], params["i_b"],
      params["o_w"], params["o_b"],
      params["ln2_g"], params["ln2_b"],
      params["pooler_w"], params["pooler_b"])
    return out                                    # (B, H)


# -----------------------------------------------------------------------------
# Parameter initialization (deterministic, synthetic, pre-stacked per layer).
# Matmul weights in bf16 (MXU feed); biases / LN params / embeddings in f32.
# -----------------------------------------------------------------------------
def init_params(key, cfg):
    H, I, L = cfg.hidden_size, cfg.intermediate_size, cfg.num_layers
    k = jax.random.split(key, 8)

    def w(kk, shape, dtype=jnp.bfloat16):
        return (0.02 * jax.random.normal(kk, shape, jnp.float32)).astype(dtype)

    return {
        "word_emb": w(k[0], (cfg.vocab_size, H), jnp.float32),
        "pos_emb": w(k[1], (cfg.max_position_embeddings, H), jnp.float32),
        "type_emb": w(k[2], (cfg.type_vocab_size, H), jnp.float32),
        "emb_ln_g": jnp.ones((1, H), jnp.float32),
        "emb_ln_b": jnp.zeros((1, H), jnp.float32),
        "qkv_w": w(k[3], (L, H, 3 * H)),          # bf16
        "qkv_b": jnp.zeros((L, 1, 3 * H), jnp.float32),
        "ao_w": w(k[4], (L, H, H)),               # bf16
        "ao_b": jnp.zeros((L, 1, H), jnp.float32),
        "ln1_g": jnp.ones((L, 1, H), jnp.float32),
        "ln1_b": jnp.zeros((L, 1, H), jnp.float32),
        "i_w": w(k[5], (L, H, I)),                # bf16
        "i_b": jnp.zeros((L, 1, I), jnp.float32),
        "o_w": w(k[6], (L, I, H)),                # bf16
        "o_b": jnp.zeros((L, 1, H), jnp.float32),
        "ln2_g": jnp.ones((L, 1, H), jnp.float32),
        "ln2_b": jnp.zeros((L, 1, H), jnp.float32),
        "pooler_w": w(k[7], (H, H)),              # bf16
        "pooler_b": jnp.zeros((1, H), jnp.float32),
    }


# -----------------------------------------------------------------------------
# Forward pass: embedding gather in JAX glue, everything else in ONE kernel.
# -----------------------------------------------------------------------------
def bert_pooler_output(params, input_ids, attention_mask, cfg):
    B, S = input_ids.shape

    # TODO(synk): data-dependent embedding row gather stays in plain JAX glue.
    pos_ids = jnp.arange(S)
    emb = (params["word_emb"][input_ids]
           + params["pos_emb"][pos_ids][None, :, :]
           + params["type_emb"][0][None, None, :])          # token_type_ids=0

    # (1 - mask) * large_negative, shape (B, 1, S), broadcast over query rows.
    ext_mask = ((1.0 - attention_mask.astype(jnp.float32)) * -1e9)[:, None, :]

    return fused_bert_forward(emb, ext_mask, params, cfg)   # (B, H)


# -----------------------------------------------------------------------------
if __name__ == "__main__":
    cfg = Config()
    key = jax.random.PRNGKey(0)
    pkey, ikey = jax.random.split(key)

    params = init_params(pkey, cfg)

    B, S = 2, 8
    input_ids = jax.random.randint(ikey, (B, S), 0, cfg.vocab_size,
                                   dtype=jnp.int32)
    attention_mask = jnp.ones((B, S), jnp.int32)
    attention_mask = attention_mask.at[1, 6:].set(0)        # some padding

    fwd = jax.jit(functools.partial(bert_pooler_output, cfg=cfg))
    pooled = fwd(params, input_ids, attention_mask)
    pooled = jax.block_until_ready(pooled)

    assert pooled.shape == (B, cfg.hidden_size)
    assert bool(jnp.all(jnp.isfinite(pooled)))
    print("KERNEL_OK")
</pallas_src>

<mosaic_0001>
module attributes {stable_mosaic.version = 11 : i64} {
  func.func @_bert_kernel(%arg0: memref<16x32xf32, #tpu.memory_space<vmem>>, %arg1: memref<2x1x8xf32, #tpu.memory_space<vmem>>, %arg2: memref<1x32xf32, #tpu.memory_space<vmem>>, %arg3: memref<1x32xf32, #tpu.memory_space<vmem>>, %arg4: memref<2x32x96xbf16, #tpu.memory_space<vmem>>, %arg5: memref<2x1x96xf32, #tpu.memory_space<vmem>>, %arg6: memref<2x32x32xbf16, #tpu.memory_space<vmem>>, %arg7: memref<2x1x32xf32, #tpu.memory_space<vmem>>, %arg8: memref<2x1x32xf32, #tpu.memory_space<vmem>>, %arg9: memref<2x1x32xf32, #tpu.memory_space<vmem>>, %arg10: memref<2x32x64xbf16, #tpu.memory_space<vmem>>, %arg11: memref<2x1x64xf32, #tpu.memory_space<vmem>>, %arg12: memref<2x64x32xbf16, #tpu.memory_space<vmem>>, %arg13: memref<2x1x32xf32, #tpu.memory_space<vmem>>, %arg14: memref<2x1x32xf32, #tpu.memory_space<vmem>>, %arg15: memref<2x1x32xf32, #tpu.memory_space<vmem>>, %arg16: memref<32x32xbf16, #tpu.memory_space<vmem>>, %arg17: memref<1x32xf32, #tpu.memory_space<vmem>>, %arg18: memref<2x32xf32, #tpu.memory_space<vmem>>) attributes {dimension_semantics = [], scalar_prefetch = 0 : i64, scratch_operands = 0 : i64, tpu.core_type = #tpu.core_type<tc>} {
    %c0 = arith.constant 0 : index
    %c0_0 = arith.constant 0 : index
    %0 = vector.load %arg0[%c0, %c0_0] : memref<16x32xf32, #tpu.memory_space<vmem>>, vector<16x32xf32>
    %c0_1 = arith.constant 0 : index
    %c0_2 = arith.constant 0 : index
    %c0_3 = arith.constant 0 : index
    %1 = vector.load %arg1[%c0_1, %c0_2, %c0_3] : memref<2x1x8xf32, #tpu.memory_space<vmem>>, vector<2x1x8xf32>
    %c0_4 = arith.constant 0 : index
    %c0_5 = arith.constant 0 : index
    %2 = vector.load %arg2[%c0_4, %c0_5] : memref<1x32xf32, #tpu.memory_space<vmem>>, vector<1x32xf32>
    %c0_6 = arith.constant 0 : index
    %c0_7 = arith.constant 0 : index
    %3 = vector.load %arg3[%c0_6, %c0_7] : memref<1x32xf32, #tpu.memory_space<vmem>>, vector<1x32xf32>
    %cst = arith.constant dense<0.000000e+00> : vector<16xf32>
    %4 = vector.multi_reduction <add>, %0, %cst [1] : vector<16x32xf32> to vector<16xf32>
    %5 = vector.shape_cast %4 : vector<16xf32> to vector<16x1xf32>
    %cst_8 = arith.constant 3.200000e+01 : f32
    %6 = vector.broadcast %cst_8 : f32 to vector<16x1xf32>
    %7 = arith.divf %5, %6 : vector<16x1xf32>
    %8 = vector.broadcast %7 : vector<16x1xf32> to vector<16x32xf32>
    %9 = arith.subf %0, %8 : vector<16x32xf32>
    %10 = arith.mulf %9, %9 : vector<16x32xf32>
    %cst_9 = arith.constant dense<0.000000e+00> : vector<16xf32>
    %11 = vector.multi_reduction <add>, %10, %cst_9 [1] : vector<16x32xf32> to vector<16xf32>
    %12 = vector.shape_cast %11 : vector<16xf32> to vector<16x1xf32>
    %cst_10 = arith.constant 3.200000e+01 : f32
    %13 = vector.broadcast %cst_10 : f32 to vector<16x1xf32>
    %14 = arith.divf %12, %13 : vector<16x1xf32>
    %15 = vector.broadcast %7 : vector<16x1xf32> to vector<16x32xf32>
    %16 = arith.subf %0, %15 : vector<16x32xf32>
    %cst_11 = arith.constant 9.99999996E-13 : f32
    %17 = vector.broadcast %cst_11 : f32 to vector<16x1xf32>
    %18 = arith.addf %14, %17 : vector<16x1xf32>
    %19 = math.rsqrt %18 : vector<16x1xf32>
    %20 = vector.broadcast %19 : vector<16x1xf32> to vector<16x32xf32>
    %21 = arith.mulf %16, %20 : vector<16x32xf32>
    %22 = vector.broadcast %2 : vector<1x32xf32> to vector<16x32xf32>
    %23 = arith.mulf %21, %22 : vector<16x32xf32>
    %24 = vector.broadcast %3 : vector<1x32xf32> to vector<16x32xf32>
    %25 = arith.addf %23, %24 : vector<16x32xf32>
    %26 = arith.truncf %25 : vector<16x32xf32> to vector<16x32xbf16>
    %c0_12 = arith.constant 0 : index
    %c0_13 = arith.constant 0 : index
    %c0_14 = arith.constant 0 : index
    %27 = vector.load %arg4[%c0_12, %c0_13, %c0_14] : memref<2x32x96xbf16, #tpu.memory_space<vmem>>, vector<1x32x96xbf16>
    %28 = vector.shape_cast %27 : vector<1x32x96xbf16> to vector<32x96xbf16>
    %cst_15 = arith.constant dense<0.000000e+00> : vector<16x96xf32>
    %29 = tpu.matmul %26, %28, %cst_15 {dimension_numbers = #tpu.dot_dimension_numbers<[1], [0], [0], [1], [0, 0, 1, 1], [], []>} : vector<16x32xbf16>, vector<32x96xbf16>, vector<16x96xf32> -> vector<16x96xf32>
    %c0_16 = arith.constant 0 : index
    %c0_17 = arith.constant 0 : index
    %c0_18 = arith.constant 0 : index
    %30 = vector.load %arg5[%c0_16, %c0_17, %c0_18] : memref<2x1x96xf32, #tpu.memory_space<vmem>>, vector<1x1x96xf32>
    %31 = vector.shape_cast %30 : vector<1x1x96xf32> to vector<1x96xf32>
    %32 = vector.broadcast %31 : vector<1x96xf32> to vector<16x96xf32>
    %33 = arith.addf %29, %32 : vector<16x96xf32>
    %34 = vector.shape_cast %33 : vector<16x96xf32> to vector<2x8x96xf32>
    %c0_19 = arith.constant 0 : index
    %c0_20 = arith.constant 0 : index
    %c0_21 = arith.constant 0 : index
    %35 = vector.load %arg6[%c0_19, %c0_20, %c0_21] : memref<2x32x32xbf16, #tpu.memory_space<vmem>>, vector<1x32x32xbf16>
    %36 = vector.shape_cast %35 : vector<1x32x32xbf16> to vector<32x32xbf16>
    %cst_22 = arith.constant 0.000000e+00 : f32
    %37 = vector.broadcast %cst_22 : f32 to vector<16x32xf32>
    %38 = vector.extract_strided_slice %34 {offsets = [0, 0, 0], sizes = [2, 8, 16], strides = [1, 1, 1]} : vector<2x8x96xf32> to vector<2x8x16xf32>
    %39 = arith.truncf %38 : vector<2x8x16xf32> to vector<2x8x16xbf16>
    %40 = vector.extract_strided_slice %34 {offsets = [0, 0, 32], sizes = [2, 8, 16], strides = [1, 1, 1]} : vector<2x8x96xf32> to vector<2x8x16xf32>
    %41 = arith.truncf %40 : vector<2x8x16xf32> to vector<2x8x16xbf16>
    %42 = vector.extract_strided_slice %34 {offsets = [0, 0, 64], sizes = [2, 8, 16], strides = [1, 1, 1]} : vector<2x8x96xf32> to vector<2x8x16xf32>
    %43 = arith.truncf %42 : vector<2x8x16xf32> to vector<2x8x16xbf16>
    "tpu.trace_start"() <{level = 10 : i32, message = "bqd,bkd->bqk"}> : () -> ()
    %cst_23 = arith.constant dense<0.000000e+00> : vector<2x8x8xf32>
    %44 = tpu.matmul %39, %41, %cst_23 {dimension_numbers = #tpu.dot_dimension_numbers<[2], [2], [1], [1], [0, 0, 0, 1, 1, 1], [0], [0]>} : vector<2x8x16xbf16>, vector<2x8x16xbf16>, vector<2x8x8xf32> -> vector<2x8x8xf32>
    "tpu.trace_stop"() : () -> ()
    %cst_24 = arith.constant 2.500000e-01 : f32
    %45 = vector.broadcast %cst_24 : f32 to vector<2x8x8xf32>
    %46 = arith.mulf %44, %45 : vector<2x8x8xf32>
    %47 = vector.broadcast %1 : vector<2x1x8xf32> to vector<2x8x8xf32>
    %48 = arith.addf %46, %47 : vector<2x8x8xf32>
    %cst_25 = arith.constant dense<0xFF800000> : vector<2x8xf32>
    %49 = vector.multi_reduction <maximumf>, %48, %cst_25 [2] : vector<2x8x8xf32> to vector<2x8xf32>
    %50 = vector.shape_cast %49 : vector<2x8xf32> to vector<2x8x1xf32>
    %51 = vector.broadcast %50 : vector<2x8x1xf32> to vector<2x8x8xf32>
    %52 = arith.subf %48, %51 : vector<2x8x8xf32>
    %53 = math.exp %52 : vector<2x8x8xf32>
    %cst_26 = arith.constant dense<0.000000e+00> : vector<2x8xf32>
    %54 = vector.multi_reduction <add>, %53, %cst_26 [2] : vector<2x8x8xf32> to vector<2x8xf32>
    %55 = vector.shape_cast %54 : vector<2x8xf32> to vector<2x8x1xf32>
    %56 = vector.broadcast %55 : vector<2x8x1xf32> to vector<2x8x8xf32>
    %57 = arith.divf %53, %56 : vector<2x8x8xf32>
    %58 = arith.truncf %57 : vector<2x8x8xf32> to vector<2x8x8xbf16>
    "tpu.trace_start"() <{level = 10 : i32, message = "bqk,bkd->bqd"}> : () -> ()
    %cst_27 = arith.constant dense<0.000000e+00> : vector<2x8x16xf32>
    %59 = tpu.matmul %58, %43, %cst_27 {dimension_numbers = #tpu.dot_dimension_numbers<[2], [1], [1], [2], [0, 0, 0, 1, 1, 2], [0], [0]>} : vector<2x8x8xbf16>, vector<2x8x16xbf16>, vector<2x8x16xf32> -> vector<2x8x16xf32>
    "tpu.trace_stop"() : () -> ()
    %60 = vector.shape_cast %59 : vector<2x8x16xf32> to vector<16x16xf32>
    %61 = arith.truncf %60 : vector<16x16xf32> to vector<16x16xbf16>
    %62 = vector.extract_strided_slice %36 {offsets = [0, 0], sizes = [16, 32], strides = [1, 1]} : vector<32x32xbf16> to vector<16x32xbf16>
    %cst_28 = arith.constant dense<0.000000e+00> : vector<16x32xf32>
    %63 = tpu.matmul %61, %62, %cst_28 {dimension_numbers = #tpu.dot_dimension_numbers<[1], [0], [0], [1], [0, 0, 1, 1], [], []>} : vector<16x16xbf16>, vector<16x32xbf16>, vector<16x32xf32> -> vector<16x32xf32>
    %64 = arith.addf %37, %63 : vector<16x32xf32>
    %65 = vector.extract_strided_slice %34 {offsets = [0, 0, 16], sizes = [2, 8, 16], strides = [1, 1, 1]} : vector<2x8x96xf32> to vector<2x8x16xf32>
    %66 = arith.truncf %65 : vector<2x8x16xf32> to vector<2x8x16xbf16>
    %67 = vector.extract_strided_slice %34 {offsets = [0, 0, 48], sizes = [2, 8, 16], strides = [1, 1, 1]} : vector<2x8x96xf32> to vector<2x8x16xf32>
    %68 = arith.truncf %67 : vector<2x8x16xf32> to vector<2x8x16xbf16>
    %69 = vector.extract_strided_slice %34 {offsets = [0, 0, 80], sizes = [2, 8, 16], strides = [1, 1, 1]} : vector<2x8x96xf32> to vector<2x8x16xf32>
    %70 = arith.truncf %69 : vector<2x8x16xf32> to vector<2x8x16xbf16>
    "tpu.trace_start"() <{level = 10 : i32, message = "bqd,bkd->bqk"}> : () -> ()
    %cst_29 = arith.constant dense<0.000000e+00> : vector<2x8x8xf32>
    %71 = tpu.matmul %66, %68, %cst_29 {dimension_numbers = #tpu.dot_dimension_numbers<[2], [2], [1], [1], [0, 0, 0, 1, 1, 1], [0], [0]>} : vector<2x8x16xbf16>, vector<2x8x16xbf16>, vector<2x8x8xf32> -> vector<2x8x8xf32>
    "tpu.trace_stop"() : () -> ()
    %cst_30 = arith.constant 2.500000e-01 : f32
    %72 = vector.broadcast %cst_30 : f32 to vector<2x8x8xf32>
    %73 = arith.mulf %71, %72 : vector<2x8x8xf32>
    %74 = vector.broadcast %1 : vector<2x1x8xf32> to vector<2x8x8xf32>
    %75 = arith.addf %73, %74 : vector<2x8x8xf32>
    %cst_31 = arith.constant dense<0xFF800000> : vector<2x8xf32>
    %76 = vector.multi_reduction <maximumf>, %75, %cst_31 [2] : vector<2x8x8xf32> to vector<2x8xf32>
    %77 = vector.shape_cast %76 : vector<2x8xf32> to vector<2x8x1xf32>
    %78 = vector.broadcast %77 : vector<2x8x1xf32> to vector<2x8x8xf32>
    %79 = arith.subf %75, %78 : vector<2x8x8xf32>
    %80 = math.exp %79 : vector<2x8x8xf32>
    %cst_32 = arith.constant dense<0.000000e+00> : vector<2x8xf32>
    %81 = vector.multi_reduction <add>, %80, %cst_32 [2] : vector<2x8x8xf32> to vector<2x8xf32>
    %82 = vector.shape_cast %81 : vector<2x8xf32> to vector<2x8x1xf32>
    %83 = vector.broadcast %82 : vector<2x8x1xf32> to vector<2x8x8xf32>
    %84 = arith.divf %80, %83 : vector<2x8x8xf32>
    %85 = arith.truncf %84 : vector<2x8x8xf32> to vector<2x8x8xbf16>
    "tpu.trace_start"() <{level = 10 : i32, message = "bqk,bkd->bqd"}> : () -> ()
    %cst_33 = arith.constant dense<0.000000e+00> : vector<2x8x16xf32>
    %86 = tpu.matmul %85, %70, %cst_33 {dimension_numbers = #tpu.dot_dimension_numbers<[2], [1], [1], [2], [0, 0, 0, 1, 1, 2], [0], [0]>} : vector<2x8x8xbf16>, vector<2x8x16xbf16>, vector<2x8x16xf32> -> vector<2x8x16xf32>
    "tpu.trace_stop"() : () -> ()
    %87 = vector.shape_cast %86 : vector<2x8x16xf32> to vector<16x16xf32>
    %88 = arith.truncf %87 : vector<16x16xf32> to vector<16x16xbf16>
    %89 = vector.extract_strided_slice %36 {offsets = [16, 0], sizes = [16, 32], strides = [1, 1]} : vector<32x32xbf16> to vector<16x32xbf16>
    %cst_34 = arith.constant dense<0.000000e+00> : vector<16x32xf32>
    %90 = tpu.matmul %88, %89, %cst_34 {dimension_numbers = #tpu.dot_dimension_numbers<[1], [0], [0], [1], [0, 0, 1, 1], [], []>} : vector<16x16xbf16>, vector<16x32xbf16>, vector<16x32xf32> -> vector<16x32xf32>
    %91 = arith.addf %64, %90 : vector<16x32xf32>
    %c0_35 = arith.constant 0 : index
    %c0_36 = arith.constant 0 : index
    %c0_37 = arith.constant 0 : index
    %92 = vector.load %arg7[%c0_35, %c0_36, %c0_37] : memref<2x1x32xf32, #tpu.memory_space<vmem>>, vector<1x1x32xf32>
    %93 = vector.shape_cast %92 : vector<1x1x32xf32> to vector<1x32xf32>
    %94 = vector.broadcast %93 : vector<1x32xf32> to vector<16x32xf32>
    %95 = arith.addf %91, %94 : vector<16x32xf32>
    %96 = arith.addf %95, %25 : vector<16x32xf32>
    %c0_38 = arith.constant 0 : index
    %c0_39 = arith.constant 0 : index
    %c0_40 = arith.constant 0 : index
    %97 = vector.load %arg8[%c0_38, %c0_39, %c0_40] : memref<2x1x32xf32, #tpu.memory_space<vmem>>, vector<1x1x32xf32>
    %98 = vector.shape_cast %97 : vector<1x1x32xf32> to vector<1x32xf32>
    %c0_41 = arith.constant 0 : index
    %c0_42 = arith.constant 0 : index
    %c0_43 = arith.constant 0 : index
    %99 = vector.load %arg9[%c0_41, %c0_42, %c0_43] : memref<2x1x32xf32, #tpu.memory_space<vmem>>, vector<1x1x32xf32>
    %100 = vector.shape_cast %99 : vector<1x1x32xf32> to vector<1x32xf32>
    %cst_44 = arith.constant dense<0.000000e+00> : vector<16xf32>
    %101 = vector.multi_reduction <add>, %96, %cst_44 [1] : vector<16x32xf32> to vector<16xf32>
    %102 = vector.shape_cast %101 : vector<16xf32> to vector<16x1xf32>
    %cst_45 = arith.constant 3.200000e+01 : f32
    %103 = vector.broadcast %cst_45 : f32 to vector<16x1xf32>
    %104 = arith.divf %102, %103 : vector<16x1xf32>
    %105 = vector.broadcast %104 : vector<16x1xf32> to vector<16x32xf32>
    %106 = arith.subf %96, %105 : vector<16x32xf32>
    %107 = arith.mulf %106, %106 : vector<16x32xf32>
    %cst_46 = arith.constant dense<0.000000e+00> : vector<16xf32>
    %108 = vector.multi_reduction <add>, %107, %cst_46 [1] : vector<16x32xf32> to vector<16xf32>
    %109 = vector.shape_cast %108 : vector<16xf32> to vector<16x1xf32>
    %cst_47 = arith.constant 3.200000e+01 : f32
    %110 = vector.broadcast %cst_47 : f32 to vector<16x1xf32>
    %111 = arith.divf %109, %110 : vector<16x1xf32>
    %112 = vector.broadcast %104 : vector<16x1xf32> to vector<16x32xf32>
    %113 = arith.subf %96, %112 : vector<16x32xf32>
    %cst_48 = arith.constant 9.99999996E-13 : f32
    %114 = vector.broadcast %cst_48 : f32 to vector<16x1xf32>
    %115 = arith.addf %111, %114 : vector<16x1xf32>
    %116 = math.rsqrt %115 : vector<16x1xf32>
    %117 = vector.broadcast %116 : vector<16x1xf32> to vector<16x32xf32>
    %118 = arith.mulf %113, %117 : vector<16x32xf32>
    %119 = vector.broadcast %98 : vector<1x32xf32> to vector<16x32xf32>
    %120 = arith.mulf %118, %119 : vector<16x32xf32>
    %121 = vector.broadcast %100 : vector<1x32xf32> to vector<16x32xf32>
    %122 = arith.addf %120, %121 : vector<16x32xf32>
    %123 = arith.truncf %122 : vector<16x32xf32> to vector<16x32xbf16>
    %c0_49 = arith.constant 0 : index
    %c0_50 = arith.constant 0 : index
    %c0_51 = arith.constant 0 : index
    %124 = vector.load %arg10[%c0_49, %c0_50, %c0_51] : memref<2x32x64xbf16, #tpu.memory_space<vmem>>, vector<1x32x64xbf16>
    %125 = vector.shape_cast %124 : vector<1x32x64xbf16> to vector<32x64xbf16>
    %cst_52 = arith.constant dense<0.000000e+00> : vector<16x64xf32>
    %126 = tpu.matmul %123, %125, %cst_52 {dimension_numbers = #tpu.dot_dimension_numbers<[1], [0], [0], [1], [0, 0, 1, 1], [], []>} : vector<16x32xbf16>, vector<32x64xbf16>, vector<16x64xf32> -> vector<16x64xf32>
    %c0_53 = arith.constant 0 : index
    %c0_54 = arith.constant 0 : index
    %c0_55 = arith.constant 0 : index
    %127 = vector.load %arg11[%c0_53, %c0_54, %c0_55] : memref<2x1x64xf32, #tpu.memory_space<vmem>>, vector<1x1x64xf32>
    %128 = vector.shape_cast %127 : vector<1x1x64xf32> to vector<1x64xf32>
    %129 = vector.broadcast %128 : vector<1x64xf32> to vector<16x64xf32>
    %130 = arith.addf %126, %129 : vector<16x64xf32>
    %cst_56 = arith.constant 5.000000e-01 : f32
    %131 = vector.broadcast %cst_56 : f32 to vector<16x64xf32>
    %132 = arith.mulf %131, %130 : vector<16x64xf32>
    %cst_57 = arith.constant 0.707106769 : f32
    %133 = vector.broadcast %cst_57 : f32 to vector<16x64xf32>
    %134 = arith.mulf %130, %133 : vector<16x64xf32>
    %135 = math.erf %134 : vector<16x64xf32>
    %cst_58 = arith.constant 1.000000e+00 : f32
    %136 = vector.broadcast %cst_58 : f32 to vector<16x64xf32>
    %137 = arith.addf %136, %135 : vector<16x64xf32>
    %138 = arith.mulf %132, %137 : vector<16x64xf32>
    %139 = arith.truncf %138 : vector<16x64xf32> to vector<16x64xbf16>
    %c0_59 = arith.constant 0 : index
    %c0_60 = arith.constant 0 : index
    %c0_61 = arith.constant 0 : index
    %140 = vector.load %arg12[%c0_59, %c0_60, %c0_61] : memref<2x64x32xbf16, #tpu.memory_space<vmem>>, vector<1x64x32xbf16>
    %141 = vector.shape_cast %140 : vector<1x64x32xbf16> to vector<64x32xbf16>
    %cst_62 = arith.constant dense<0.000000e+00> : vector<16x32xf32>
    %142 = tpu.matmul %139, %141, %cst_62 {dimension_numbers = #tpu.dot_dimension_numbers<[1], [0], [0], [1], [0, 0, 1, 1], [], []>} : vector<16x64xbf16>, vector<64x32xbf16>, vector<16x32xf32> -> vector<16x32xf32>
    %c0_63 = arith.constant 0 : index
    %c0_64 = arith.constant 0 : index
    %c0_65 = arith.constant 0 : index
    %143 = vector.load %arg13[%c0_63, %c0_64, %c0_65] : memref<2x1x32xf32, #tpu.memory_space<vmem>>, vector<1x1x32xf32>
    %144 = vector.shape_cast %143 : vector<1x1x32xf32> to vector<1x32xf32>
    %145 = vector.broadcast %144 : vector<1x32xf32> to vector<16x32xf32>
    %146 = arith.addf %142, %145 : vector<16x32xf32>
    %147 = arith.addf %146, %122 : vector<16x32xf32>
    %c0_66 = arith.constant 0 : index
    %c0_67 = arith.constant 0 : index
    %c0_68 = arith.constant 0 : index
    %148 = vector.load %arg14[%c0_66, %c0_67, %c0_68] : memref<2x1x32xf32, #tpu.memory_space<vmem>>, vector<1x1x32xf32>
    %149 = vector.shape_cast %148 : vector<1x1x32xf32> to vector<1x32xf32>
    %c0_69 = arith.constant 0 : index
    %c0_70 = arith.constant 0 : index
    %c0_71 = arith.constant 0 : index
    %150 = vector.load %arg15[%c0_69, %c0_70, %c0_71] : memref<2x1x32xf32, #tpu.memory_space<vmem>>, vector<1x1x32xf32>
    %151 = vector.shape_cast %150 : vector<1x1x32xf32> to vector<1x32xf32>
    %cst_72 = arith.constant dense<0.000000e+00> : vector<16xf32>
    %152 = vector.multi_reduction <add>, %147, %cst_72 [1] : vector<16x32xf32> to vector<16xf32>
    %153 = vector.shape_cast %152 : vector<16xf32> to vector<16x1xf32>
    %cst_73 = arith.constant 3.200000e+01 : f32
    %154 = vector.broadcast %cst_73 : f32 to vector<16x1xf32>
    %155 = arith.divf %153, %154 : vector<16x1xf32>
    %156 = vector.broadcast %155 : vector<16x1xf32> to vector<16x32xf32>
    %157 = arith.subf %147, %156 : vector<16x32xf32>
    %158 = arith.mulf %157, %157 : vector<16x32xf32>
    %cst_74 = arith.constant dense<0.000000e+00> : vector<16xf32>
    %159 = vector.multi_reduction <add>, %158, %cst_74 [1] : vector<16x32xf32> to vector<16xf32>
    %160 = vector.shape_cast %159 : vector<16xf32> to vector<16x1xf32>
    %cst_75 = arith.constant 3.200000e+01 : f32
    %161 = vector.broadcast %cst_75 : f32 to vector<16x1xf32>
    %162 = arith.divf %160, %161 : vector<16x1xf32>
    %163 = vector.broadcast %155 : vector<16x1xf32> to vector<16x32xf32>
    %164 = arith.subf %147, %163 : vector<16x32xf32>
    %cst_76 = arith.constant 9.99999996E-13 : f32
    %165 = vector.broadcast %cst_76 : f32 to vector<16x1xf32>
    %166 = arith.addf %162, %165 : vector<16x1xf32>
    %167 = math.rsqrt %166 : vector<16x1xf32>
    %168 = vector.broadcast %167 : vector<16x1xf32> to vector<16x32xf32>
    %169 = arith.mulf %164, %168 : vector<16x32xf32>
    %170 = vector.broadcast %149 : vector<1x32xf32> to vector<16x32xf32>
    %171 = arith.mulf %169, %170 : vector<16x32xf32>
    %172 = vector.broadcast %151 : vector<1x32xf32> to vector<16x32xf32>
    %173 = arith.addf %171, %172 : vector<16x32xf32>
    %174 = arith.truncf %173 : vector<16x32xf32> to vector<16x32xbf16>
    %c1 = arith.constant 1 : index
    %c0_77 = arith.constant 0 : index
    %c0_78 = arith.constant 0 : index
    %175 = vector.load %arg4[%c1, %c0_77, %c0_78] : memref<2x32x96xbf16, #tpu.memory_space<vmem>>, vector<1x32x96xbf16>
    %176 = vector.shape_cast %175 : vector<1x32x96xbf16> to vector<32x96xbf16>
    %cst_79 = arith.constant dense<0.000000e+00> : vector<16x96xf32>
    %177 = tpu.matmul %174, %176, %cst_79 {dimension_numbers = #tpu.dot_dimension_numbers<[1], [0], [0], [1], [0, 0, 1, 1], [], []>} : vector<16x32xbf16>, vector<32x96xbf16>, vector<16x96xf32> -> vector<16x96xf32>
    %c1_80 = arith.constant 1 : index
    %c0_81 = arith.constant 0 : index
    %c0_82 = arith.constant 0 : index
    %178 = vector.load %arg5[%c1_80, %c0_81, %c0_82] : memref<2x1x96xf32, #tpu.memory_space<vmem>>, vector<1x1x96xf32>
    %179 = vector.shape_cast %178 : vector<1x1x96xf32> to vector<1x96xf32>
    %180 = vector.broadcast %179 : vector<1x96xf32> to vector<16x96xf32>
    %181 = arith.addf %177, %180 : vector<16x96xf32>
    %182 = vector.shape_cast %181 : vector<16x96xf32> to vector<2x8x96xf32>
    %c1_83 = arith.constant 1 : index
    %c0_84 = arith.constant 0 : index
    %c0_85 = arith.constant 0 : index
    %183 = vector.load %arg6[%c1_83, %c0_84, %c0_85] : memref<2x32x32xbf16, #tpu.memory_space<vmem>>, vector<1x32x32xbf16>
    %184 = vector.shape_cast %183 : vector<1x32x32xbf16> to vector<32x32xbf16>
    %cst_86 = arith.constant 0.000000e+00 : f32
    %185 = vector.broadcast %cst_86 : f32 to vector<16x32xf32>
    %186 = vector.extract_strided_slice %182 {offsets = [0, 0, 0], sizes = [2, 8, 16], strides = [1, 1, 1]} : vector<2x8x96xf32> to vector<2x8x16xf32>
    %187 = arith.truncf %186 : vector<2x8x16xf32> to vector<2x8x16xbf16>
    %188 = vector.extract_strided_slice %182 {offsets = [0, 0, 32], sizes = [2, 8, 16], strides = [1, 1, 1]} : vector<2x8x96xf32> to vector<2x8x16xf32>
    %189 = arith.truncf %188 : vector<2x8x16xf32> to vector<2x8x16xbf16>
    %190 = vector.extract_strided_slice %182 {offsets = [0, 0, 64], sizes = [2, 8, 16], strides = [1, 1, 1]} : vector<2x8x96xf32> to vector<2x8x16xf32>
    %191 = arith.truncf %190 : vector<2x8x16xf32> to vector<2x8x16xbf16>
    "tpu.trace_start"() <{level = 10 : i32, message = "bqd,bkd->bqk"}> : () -> ()
    %cst_87 = arith.constant dense<0.000000e+00> : vector<2x8x8xf32>
    %192 = tpu.matmul %187, %189, %cst_87 {dimension_numbers = #tpu.dot_dimension_numbers<[2], [2], [1], [1], [0, 0, 0, 1, 1, 1], [0], [0]>} : vector<2x8x16xbf16>, vector<2x8x16xbf16>, vector<2x8x8xf32> -> vector<2x8x8xf32>
    "tpu.trace_stop"() : () -> ()
    %cst_88 = arith.constant 2.500000e-01 : f32
    %193 = vector.broadcast %cst_88 : f32 to vector<2x8x8xf32>
    %194 = arith.mulf %192, %193 : vector<2x8x8xf32>
    %195 = vector.broadcast %1 : vector<2x1x8xf32> to vector<2x8x8xf32>
    %196 = arith.addf %194, %195 : vector<2x8x8xf32>
    %cst_89 = arith.constant dense<0xFF800000> : vector<2x8xf32>
    %197 = vector.multi_reduction <maximumf>, %196, %cst_89 [2] : vector<2x8x8xf32> to vector<2x8xf32>
    %198 = vector.shape_cast %197 : vector<2x8xf32> to vector<2x8x1xf32>
    %199 = vector.broadcast %198 : vector<2x8x1xf32> to vector<2x8x8xf32>
    %200 = arith.subf %196, %199 : vector<2x8x8xf32>
    %201 = math.exp %200 : vector<2x8x8xf32>
    %cst_90 = arith.constant dense<0.000000e+00> : vector<2x8xf32>
    %202 = vector.multi_reduction <add>, %201, %cst_90 [2] : vector<2x8x8xf32> to vector<2x8xf32>
    %203 = vector.shape_cast %202 : vector<2x8xf32> to vector<2x8x1xf32>
    %204 = vector.broadcast %203 : vector<2x8x1xf32> to vector<2x8x8xf32>
    %205 = arith.divf %201, %204 : vector<2x8x8xf32>
    %206 = arith.truncf %205 : vector<2x8x8xf32> to vector<2x8x8xbf16>
    "tpu.trace_start"() <{level = 10 : i32, message = "bqk,bkd->bqd"}> : () -> ()
    %cst_91 = arith.constant dense<0.000000e+00> : vector<2x8x16xf32>
    %207 = tpu.matmul %206, %191, %cst_91 {dimension_numbers = #tpu.dot_dimension_numbers<[2], [1], [1], [2], [0, 0, 0, 1, 1, 2], [0], [0]>} : vector<2x8x8xbf16>, vector<2x8x16xbf16>, vector<2x8x16xf32> -> vector<2x8x16xf32>
    "tpu.trace_stop"() : () -> ()
    %208 = vector.shape_cast %207 : vector<2x8x16xf32> to vector<16x16xf32>
    %209 = arith.truncf %208 : vector<16x16xf32> to vector<16x16xbf16>
    %210 = vector.extract_strided_slice %184 {offsets = [0, 0], sizes = [16, 32], strides = [1, 1]} : vector<32x32xbf16> to vector<16x32xbf16>
    %cst_92 = arith.constant dense<0.000000e+00> : vector<16x32xf32>
    %211 = tpu.matmul %209, %210, %cst_92 {dimension_numbers = #tpu.dot_dimension_numbers<[1], [0], [0], [1], [0, 0, 1, 1], [], []>} : vector<16x16xbf16>, vector<16x32xbf16>, vector<16x32xf32> -> vector<16x32xf32>
    %212 = arith.addf %185, %211 : vector<16x32xf32>
    %213 = vector.extract_strided_slice %182 {offsets = [0, 0, 16], sizes = [2, 8, 16], strides = [1, 1, 1]} : vector<2x8x96xf32> to vector<2x8x16xf32>
    %214 = arith.truncf %213 : vector<2x8x16xf32> to vector<2x8x16xbf16>
    %215 = vector.extract_strided_slice %182 {offsets = [0, 0, 48], sizes = [2, 8, 16], strides = [1, 1, 1]} : vector<2x8x96xf32> to vector<2x8x16xf32>
    %216 = arith.truncf %215 : vector<2x8x16xf32> to vector<2x8x16xbf16>
    %217 = vector.extract_strided_slice %182 {offsets = [0, 0, 80], sizes = [2, 8, 16], strides = [1, 1, 1]} : vector<2x8x96xf32> to vector<2x8x16xf32>
    %218 = arith.truncf %217 : vector<2x8x16xf32> to vector<2x8x16xbf16>
    "tpu.trace_start"() <{level = 10 : i32, message = "bqd,bkd->bqk"}> : () -> ()
    %cst_93 = arith.constant dense<0.000000e+00> : vector<2x8x8xf32>
    %219 = tpu.matmul %214, %216, %cst_93 {dimension_numbers = #tpu.dot_dimension_numbers<[2], [2], [1], [1], [0, 0, 0, 1, 1, 1], [0], [0]>} : vector<2x8x16xbf16>, vector<2x8x16xbf16>, vector<2x8x8xf32> -> vector<2x8x8xf32>
    "tpu.trace_stop"() : () -> ()
    %cst_94 = arith.constant 2.500000e-01 : f32
    %220 = vector.broadcast %cst_94 : f32 to vector<2x8x8xf32>
    %221 = arith.mulf %219, %220 : vector<2x8x8xf32>
    %222 = vector.broadcast %1 : vector<2x1x8xf32> to vector<2x8x8xf32>
    %223 = arith.addf %221, %222 : vector<2x8x8xf32>
    %cst_95 = arith.constant dense<0xFF800000> : vector<2x8xf32>
    %224 = vector.multi_reduction <maximumf>, %223, %cst_95 [2] : vector<2x8x8xf32> to vector<2x8xf32>
    %225 = vector.shape_cast %224 : vector<2x8xf32> to vector<2x8x1xf32>
    %226 = vector.broadcast %225 : vector<2x8x1xf32> to vector<2x8x8xf32>
    %227 = arith.subf %223, %226 : vector<2x8x8xf32>
    %228 = math.exp %227 : vector<2x8x8xf32>
    %cst_96 = arith.constant dense<0.000000e+00> : vector<2x8xf32>
    %229 = vector.multi_reduction <add>, %228, %cst_96 [2] : vector<2x8x8xf32> to vector<2x8xf32>
    %230 = vector.shape_cast %229 : vector<2x8xf32> to vector<2x8x1xf32>
    %231 = vector.broadcast %230 : vector<2x8x1xf32> to vector<2x8x8xf32>
    %232 = arith.divf %228, %231 : vector<2x8x8xf32>
    %233 = arith.truncf %232 : vector<2x8x8xf32> to vector<2x8x8xbf16>
    "tpu.trace_start"() <{level = 10 : i32, message = "bqk,bkd->bqd"}> : () -> ()
    %cst_97 = arith.constant dense<0.000000e+00> : vector<2x8x16xf32>
    %234 = tpu.matmul %233, %218, %cst_97 {dimension_numbers = #tpu.dot_dimension_numbers<[2], [1], [1], [2], [0, 0, 0, 1, 1, 2], [0], [0]>} : vector<2x8x8xbf16>, vector<2x8x16xbf16>, vector<2x8x16xf32> -> vector<2x8x16xf32>
    "tpu.trace_stop"() : () -> ()
    %235 = vector.shape_cast %234 : vector<2x8x16xf32> to vector<16x16xf32>
    %236 = arith.truncf %235 : vector<16x16xf32> to vector<16x16xbf16>
    %237 = vector.extract_strided_slice %184 {offsets = [16, 0], sizes = [16, 32], strides = [1, 1]} : vector<32x32xbf16> to vector<16x32xbf16>
    %cst_98 = arith.constant dense<0.000000e+00> : vector<16x32xf32>
    %238 = tpu.matmul %236, %237, %cst_98 {dimension_numbers = #tpu.dot_dimension_numbers<[1], [0], [0], [1], [0, 0, 1, 1], [], []>} : vector<16x16xbf16>, vector<16x32xbf16>, vector<16x32xf32> -> vector<16x32xf32>
    %239 = arith.addf %212, %238 : vector<16x32xf32>
    %c1_99 = arith.constant 1 : index
    %c0_100 = arith.constant 0 : index
    %c0_101 = arith.constant 0 : index
    %240 = vector.load %arg7[%c1_99, %c0_100, %c0_101] : memref<2x1x32xf32, #tpu.memory_space<vmem>>, vector<1x1x32xf32>
    %241 = vector.shape_cast %240 : vector<1x1x32xf32> to vector<1x32xf32>
    %242 = vector.broadcast %241 : vector<1x32xf32> to vector<16x32xf32>
    %243 = arith.addf %239, %242 : vector<16x32xf32>
    %244 = arith.addf %243, %173 : vector<16x32xf32>
    %c1_102 = arith.constant 1 : index
    %c0_103 = arith.constant 0 : index
    %c0_104 = arith.constant 0 : index
    %245 = vector.load %arg8[%c1_102, %c0_103, %c0_104] : memref<2x1x32xf32, #tpu.memory_space<vmem>>, vector<1x1x32xf32>
    %246 = vector.shape_cast %245 : vector<1x1x32xf32> to vector<1x32xf32>
    %c1_105 = arith.constant 1 : index
    %c0_106 = arith.constant 0 : index
    %c0_107 = arith.constant 0 : index
    %247 = vector.load %arg9[%c1_105, %c0_106, %c0_107] : memref<2x1x32xf32, #tpu.memory_space<vmem>>, vector<1x1x32xf32>
    %248 = vector.shape_cast %247 : vector<1x1x32xf32> to vector<1x32xf32>
    %cst_108 = arith.constant dense<0.000000e+00> : vector<16xf32>
    %249 = vector.multi_reduction <add>, %244, %cst_108 [1] : vector<16x32xf32> to vector<16xf32>
    %250 = vector.shape_cast %249 : vector<16xf32> to vector<16x1xf32>
    %cst_109 = arith.constant 3.200000e+01 : f32
    %251 = vector.broadcast %cst_109 : f32 to vector<16x1xf32>
    %252 = arith.divf %250, %251 : vector<16x1xf32>
    %253 = vector.broadcast %252 : vector<16x1xf32> to vector<16x32xf32>
    %254 = arith.subf %244, %253 : vector<16x32xf32>
    %255 = arith.mulf %254, %254 : vector<16x32xf32>
    %cst_110 = arith.constant dense<0.000000e+00> : vector<16xf32>
    %256 = vector.multi_reduction <add>, %255, %cst_110 [1] : vector<16x32xf32> to vector<16xf32>
    %257 = vector.shape_cast %256 : vector<16xf32> to vector<16x1xf32>
    %cst_111 = arith.constant 3.200000e+01 : f32
    %258 = vector.broadcast %cst_111 : f32 to vector<16x1xf32>
    %259 = arith.divf %257, %258 : vector<16x1xf32>
    %260 = vector.broadcast %252 : vector<16x1xf32> to vector<16x32xf32>
    %261 = arith.subf %244, %260 : vector<16x32xf32>
    %cst_112 = arith.constant 9.99999996E-13 : f32
    %262 = vector.broadcast %cst_112 : f32 to vector<16x1xf32>
    %263 = arith.addf %259, %262 : vector<16x1xf32>
    %264 = math.rsqrt %263 : vector<16x1xf32>
    %265 = vector.broadcast %264 : vector<16x1xf32> to vector<16x32xf32>
    %266 = arith.mulf %261, %265 : vector<16x32xf32>
    %267 = vector.broadcast %246 : vector<1x32xf32> to vector<16x32xf32>
    %268 = arith.mulf %266, %267 : vector<16x32xf32>
    %269 = vector.broadcast %248 : vector<1x32xf32> to vector<16x32xf32>
    %270 = arith.addf %268, %269 : vector<16x32xf32>
    %271 = arith.truncf %270 : vector<16x32xf32> to vector<16x32xbf16>
    %c1_113 = arith.constant 1 : index
    %c0_114 = arith.constant 0 : index
    %c0_115 = arith.constant 0 : index
    %272 = vector.load %arg10[%c1_113, %c0_114, %c0_115] : memref<2x32x64xbf16, #tpu.memory_space<vmem>>, vector<1x32x64xbf16>
    %273 = vector.shape_cast %272 : vector<1x32x64xbf16> to vector<32x64xbf16>
    %cst_116 = arith.constant dense<0.000000e+00> : vector<16x64xf32>
    %274 = tpu.matmul %271, %273, %cst_116 {dimension_numbers = #tpu.dot_dimension_numbers<[1], [0], [0], [1], [0, 0, 1, 1], [], []>} : vector<16x32xbf16>, vector<32x64xbf16>, vector<16x64xf32> -> vector<16x64xf32>
    %c1_117 = arith.constant 1 : index
    %c0_118 = arith.constant 0 : index
    %c0_119 = arith.constant 0 : index
    %275 = vector.load %arg11[%c1_117, %c0_118, %c0_119] : memref<2x1x64xf32, #tpu.memory_space<vmem>>, vector<1x1x64xf32>
    %276 = vector.shape_cast %275 : vector<1x1x64xf32> to vector<1x64xf32>
    %277 = vector.broadcast %276 : vector<1x64xf32> to vector<16x64xf32>
    %278 = arith.addf %274, %277 : vector<16x64xf32>
    %cst_120 = arith.constant 5.000000e-01 : f32
    %279 = vector.broadcast %cst_120 : f32 to vector<16x64xf32>
    %280 = arith.mulf %279, %278 : vector<16x64xf32>
    %cst_121 = arith.constant 0.707106769 : f32
    %281 = vector.broadcast %cst_121 : f32 to vector<16x64xf32>
    %282 = arith.mulf %278, %281 : vector<16x64xf32>
    %283 = math.erf %282 : vector<16x64xf32>
    %cst_122 = arith.constant 1.000000e+00 : f32
    %284 = vector.broadcast %cst_122 : f32 to vector<16x64xf32>
    %285 = arith.addf %284, %283 : vector<16x64xf32>
    %286 = arith.mulf %280, %285 : vector<16x64xf32>
    %287 = arith.truncf %286 : vector<16x64xf32> to vector<16x64xbf16>
    %c1_123 = arith.constant 1 : index
    %c0_124 = arith.constant 0 : index
    %c0_125 = arith.constant 0 : index
    %288 = vector.load %arg12[%c1_123, %c0_124, %c0_125] : memref<2x64x32xbf16, #tpu.memory_space<vmem>>, vector<1x64x32xbf16>
    %289 = vector.shape_cast %288 : vector<1x64x32xbf16> to vector<64x32xbf16>
    %cst_126 = arith.constant dense<0.000000e+00> : vector<16x32xf32>
    %290 = tpu.matmul %287, %289, %cst_126 {dimension_numbers = #tpu.dot_dimension_numbers<[1], [0], [0], [1], [0, 0, 1, 1], [], []>} : vector<16x64xbf16>, vector<64x32xbf16>, vector<16x32xf32> -> vector<16x32xf32>
    %c1_127 = arith.constant 1 : index
    %c0_128 = arith.constant 0 : index
    %c0_129 = arith.constant 0 : index
    %291 = vector.load %arg13[%c1_127, %c0_128, %c0_129] : memref<2x1x32xf32, #tpu.memory_space<vmem>>, vector<1x1x32xf32>
    %292 = vector.shape_cast %291 : vector<1x1x32xf32> to vector<1x32xf32>
    %293 = vector.broadcast %292 : vector<1x32xf32> to vector<16x32xf32>
    %294 = arith.addf %290, %293 : vector<16x32xf32>
    %295 = arith.addf %294, %270 : vector<16x32xf32>
    %c1_130 = arith.constant 1 : index
    %c0_131 = arith.constant 0 : index
    %c0_132 = arith.constant 0 : index
    %296 = vector.load %arg14[%c1_130, %c0_131, %c0_132] : memref<2x1x32xf32, #tpu.memory_space<vmem>>, vector<1x1x32xf32>
    %297 = vector.shape_cast %296 : vector<1x1x32xf32> to vector<1x32xf32>
    %c1_133 = arith.constant 1 : index
    %c0_134 = arith.constant 0 : index
    %c0_135 = arith.constant 0 : index
    %298 = vector.load %arg15[%c1_133, %c0_134, %c0_135] : memref<2x1x32xf32, #tpu.memory_space<vmem>>, vector<1x1x32xf32>
    %299 = vector.shape_cast %298 : vector<1x1x32xf32> to vector<1x32xf32>
    %cst_136 = arith.constant dense<0.000000e+00> : vector<16xf32>
    %300 = vector.multi_reduction <add>, %295, %cst_136 [1] : vector<16x32xf32> to vector<16xf32>
    %301 = vector.shape_cast %300 : vector<16xf32> to vector<16x1xf32>
    %cst_137 = arith.constant 3.200000e+01 : f32
    %302 = vector.broadcast %cst_137 : f32 to vector<16x1xf32>
    %303 = arith.divf %301, %302 : vector<16x1xf32>
    %304 = vector.broadcast %303 : vector<16x1xf32> to vector<16x32xf32>
    %305 = arith.subf %295, %304 : vector<16x32xf32>
    %306 = arith.mulf %305, %305 : vector<16x32xf32>
    %cst_138 = arith.constant dense<0.000000e+00> : vector<16xf32>
    %307 = vector.multi_reduction <add>, %306, %cst_138 [1] : vector<16x32xf32> to vector<16xf32>
    %308 = vector.shape_cast %307 : vector<16xf32> to vector<16x1xf32>
    %cst_139 = arith.constant 3.200000e+01 : f32
    %309 = vector.broadcast %cst_139 : f32 to vector<16x1xf32>
    %310 = arith.divf %308, %309 : vector<16x1xf32>
    %311 = vector.broadcast %303 : vector<16x1xf32> to vector<16x32xf32>
    %312 = arith.subf %295, %311 : vector<16x32xf32>
    %cst_140 = arith.constant 9.99999996E-13 : f32
    %313 = vector.broadcast %cst_140 : f32 to vector<16x1xf32>
    %314 = arith.addf %310, %313 : vector<16x1xf32>
    %315 = math.rsqrt %314 : vector<16x1xf32>
    %316 = vector.broadcast %315 : vector<16x1xf32> to vector<16x32xf32>
    %317 = arith.mulf %312, %316 : vector<16x32xf32>
    %318 = vector.broadcast %297 : vector<1x32xf32> to vector<16x32xf32>
    %319 = arith.mulf %317, %318 : vector<16x32xf32>
    %320 = vector.broadcast %299 : vector<1x32xf32> to vector<16x32xf32>
    %321 = arith.addf %319, %320 : vector<16x32xf32>
    %322 = vector.extract_strided_slice %321 {offsets = [0, 0], sizes = [1, 32], strides = [1, 1]} : vector<16x32xf32> to vector<1x32xf32>
    %323 = arith.truncf %322 : vector<1x32xf32> to vector<1x32xbf16>
    %c0_141 = arith.constant 0 : index
    %c0_142 = arith.constant 0 : index
    %324 = vector.load %arg16[%c0_141, %c0_142] : memref<32x32xbf16, #tpu.memory_space<vmem>>, vector<32x32xbf16>
    %cst_143 = arith.constant dense<0.000000e+00> : vector<1x32xf32>
    %325 = tpu.matmul %323, %324, %cst_143 {dimension_numbers = #tpu.dot_dimension_numbers<[1], [0], [0], [1], [0, 0, 1, 1], [], []>} : vector<1x32xbf16>, vector<32x32xbf16>, vector<1x32xf32> -> vector<1x32xf32>
    %c0_144 = arith.constant 0 : index
    %c0_145 = arith.constant 0 : index
    %326 = vector.load %arg17[%c0_144, %c0_145] : memref<1x32xf32, #tpu.memory_space<vmem>>, vector<1x32xf32>
    %327 = arith.addf %325, %326 : vector<1x32xf32>
    %328 = math.tanh %327 : vector<1x32xf32>
    %c0_146 = arith.constant 0 : index
    %c0_147 = arith.constant 0 : index
    %329 = vector.load %arg18[%c0_146, %c0_147] : memref<2x32xf32, #tpu.memory_space<vmem>>, vector<1x32xf32>
    tpu.vector_store %arg18[%c0_146, %c0_147], %328 {strides = array<i32>} : memref<2x32xf32, #tpu.memory_space<vmem>>, vector<1x32xf32>,
    %330 = vector.extract_strided_slice %321 {offsets = [8, 0], sizes = [1, 32], strides = [1, 1]} : vector<16x32xf32> to vector<1x32xf32>
    %331 = arith.truncf %330 : vector<1x32xf32> to vector<1x32xbf16>
    %c0_148 = arith.constant 0 : index
    %c0_149 = arith.constant 0 : index
    %332 = vector.load %arg16[%c0_148, %c0_149] : memref<32x32xbf16, #tpu.memory_space<vmem>>, vector<32x32xbf16>
    %cst_150 = arith.constant dense<0.000000e+00> : vector<1x32xf32>
    %333 = tpu.matmul %331, %332, %cst_150 {dimension_numbers = #tpu.dot_dimension_numbers<[1], [0], [0], [1], [0, 0, 1, 1], [], []>} : vector<1x32xbf16>, vector<32x32xbf16>, vector<1x32xf32> -> vector<1x32xf32>
    %c0_151 = arith.constant 0 : index
    %c0_152 = arith.constant 0 : index
    %334 = vector.load %arg17[%c0_151, %c0_152] : memref<1x32xf32, #tpu.memory_space<vmem>>, vector<1x32xf32>
    %335 = arith.addf %333, %334 : vector<1x32xf32>
    %336 = math.tanh %335 : vector<1x32xf32>
    %c1_153 = arith.constant 1 : index
    %c0_154 = arith.constant 0 : index
    %337 = vector.load %arg18[%c1_153, %c0_154] : memref<2x32xf32, #tpu.memory_space<vmem>>, vector<1x32xf32>
    tpu.vector_store %arg18[%c1_153, %c0_154], %336 {strides = array<i32>} : memref<2x32xf32, #tpu.memory_space<vmem>>, vector<1x32xf32>,
    return
  }
}

</mosaic_0001>

<llo_original>
// kernel: bert_pooler_output.1
$region0: #{bert_pooler_output.1}
  #allocation0 [shape = 'u32[]', space=smem, size = 0x4, offset = 0x4, fixed_abs, tag = 'smem constant byte address 0x4 - core index']
  #allocation1 [shape = 'u32[72,128]{1,0:T(1,128)}', space=vmem, size = 0x9000, scoped, tag = 'internal scratch']
  %s0 = inlined_call_operand.vmem [shape: f32[16,32], index: 0, kind: input, shape index: {}]
  %s1 = inlined_call_operand.vmem [shape: f32[2,1,8], index: 1, kind: input, shape index: {}]
  %s2 = inlined_call_operand.vmem [shape: f32[1,32], index: 2, kind: input, shape index: {}]
  %s3 = inlined_call_operand.vmem [shape: f32[1,32], index: 3, kind: input, shape index: {}]
  %s4 = inlined_call_operand.vmem [shape: bf16[2,32,96], index: 4, kind: input, shape index: {}]
  %s5 = inlined_call_operand.vmem [shape: f32[2,1,96], index: 5, kind: input, shape index: {}]
  %s6 = inlined_call_operand.vmem [shape: bf16[2,32,32], index: 6, kind: input, shape index: {}]
  %s7 = inlined_call_operand.vmem [shape: f32[2,1,32], index: 7, kind: input, shape index: {}]
  %s8 = inlined_call_operand.vmem [shape: f32[2,1,32], index: 8, kind: input, shape index: {}]
  %s9 = inlined_call_operand.vmem [shape: f32[2,1,32], index: 9, kind: input, shape index: {}]
  %s10 = inlined_call_operand.vmem [shape: bf16[2,32,64], index: 10, kind: input, shape index: {}]
  %s11 = inlined_call_operand.vmem [shape: f32[2,1,64], index: 11, kind: input, shape index: {}]
  %s12 = inlined_call_operand.vmem [shape: bf16[2,64,32], index: 12, kind: input, shape index: {}]
  %s13 = inlined_call_operand.vmem [shape: f32[2,1,32], index: 13, kind: input, shape index: {}]
  %s14 = inlined_call_operand.vmem [shape: f32[2,1,32], index: 14, kind: input, shape index: {}]
  %s15 = inlined_call_operand.vmem [shape: f32[2,1,32], index: 15, kind: input, shape index: {}]
  %s16 = inlined_call_operand.vmem [shape: bf16[32,32], index: 16, kind: input, shape index: {}]
  %s17 = inlined_call_operand.vmem [shape: f32[1,32], index: 17, kind: input, shape index: {}]
  %s18 = inlined_call_operand.hbm [shape: f32[2,32], index: 18, kind: output, shape index: {}]
  %s19 = sld [smem:[#allocation0]]
  $region82: #{bert_pooler_output.1} parent=0
    _
  %s21 = ssub.s32 1, %s19
  %s22 = scalar_select 0, %s21, %s19
  $region1: #{bert_pooler_output.1} parent=0
    #allocation2 [shape = 'u8[1024]{0}', space=vmem, size = 0x400, scoped, tag = 'output window, operand 0, single buffered']
    #allocation3 [shape = 's32[1]{0}', space=sflag, size = 0x4, scoped, tag = 'scoped memory for bert_pooler_output.1']
    %23 = vsyncpa [#allocation3], 0
    // Predicated region
    $region2: #{bert_pooler_output.1} parent=1 // pred_check
      _
    $region3: #{bert_pooler_output.1} parent=1 // pred_check_branch
      %25 = sbr.rel (0) target = $region5
    $region4: #{bert_pooler_output.1} parent=1 // pred_region
      _
    $region5: #{bert_pooler_output.1} parent=1 // pred_fallthru
      _
    // Predicated region
    $region6: #{bert_pooler_output.1} parent=1 // pred_check
      _
    $region7: #{bert_pooler_output.1} parent=1 // pred_check_branch
      %27 = sbr.rel (0) target = $region9
    $region8: #{bert_pooler_output.1} parent=1 // pred_region
      _
    $region9: #{bert_pooler_output.1} parent=1 // pred_fallthru
      _
    // Predicated region
    $region10: #{bert_pooler_output.1} parent=1 // pred_check
      _
    $region11: #{bert_pooler_output.1} parent=1 // pred_check_branch
      %29 = sbr.rel (0) target = $region13
    $region12: #{bert_pooler_output.1} parent=1 // pred_region
      _
    $region13: #{bert_pooler_output.1} parent=1 // pred_fallthru
      _
    // Predicated region
    $region14: #{bert_pooler_output.1} parent=1 // pred_check
      _
    $region15: #{bert_pooler_output.1} parent=1 // pred_check_branch
      %31 = sbr.rel (0) target = $region17
    $region16: #{bert_pooler_output.1} parent=1 // pred_region
      _
    $region17: #{bert_pooler_output.1} parent=1 // pred_fallthru
      _
    // Predicated region
    $region18: #{bert_pooler_output.1} parent=1 // pred_check
      _
    $region19: #{bert_pooler_output.1} parent=1 // pred_check_branch
      %33 = sbr.rel (0) target = $region21
    $region20: #{bert_pooler_output.1} parent=1 // pred_region
      _
    $region21: #{bert_pooler_output.1} parent=1 // pred_fallthru
      _
    // Predicated region
    $region22: #{bert_pooler_output.1} parent=1 // pred_check
      _
    $region23: #{bert_pooler_output.1} parent=1 // pred_check_branch
      %35 = sbr.rel (0) target = $region25
    $region24: #{bert_pooler_output.1} parent=1 // pred_region
      _
    $region25: #{bert_pooler_output.1} parent=1 // pred_fallthru
      _
    // Predicated region
    $region26: #{bert_pooler_output.1} parent=1 // pred_check
      _
    $region27: #{bert_pooler_output.1} parent=1 // pred_check_branch
      %37 = sbr.rel (0) target = $region29
    $region28: #{bert_pooler_output.1} parent=1 // pred_region
      _
    $region29: #{bert_pooler_output.1} parent=1 // pred_fallthru
      _
    // Predicated region
    $region30: #{bert_pooler_output.1} parent=1 // pred_check
      _
    $region31: #{bert_pooler_output.1} parent=1 // pred_check_branch
      %39 = sbr.rel (0) target = $region33
    $region32: #{bert_pooler_output.1} parent=1 // pred_region
      _
    $region33: #{bert_pooler_output.1} parent=1 // pred_fallthru
      _
    // Predicated region
    $region34: #{bert_pooler_output.1} parent=1 // pred_check
      _
    $region35: #{bert_pooler_output.1} parent=1 // pred_check_branch
      %41 = sbr.rel (0) target = $region37
    $region36: #{bert_pooler_output.1} parent=1 // pred_region
      _
    $region37: #{bert_pooler_output.1} parent=1 // pred_fallthru
      _
    // Predicated region
    $region38: #{bert_pooler_output.1} parent=1 // pred_check
      _
    $region39: #{bert_pooler_output.1} parent=1 // pred_check_branch
      %43 = sbr.rel (0) target = $region41
    $region40: #{bert_pooler_output.1} parent=1 // pred_region
      _
    $region41: #{bert_pooler_output.1} parent=1 // pred_fallthru
      _
    // Predicated region
    $region42: #{bert_pooler_output.1} parent=1 // pred_check
      _
    $region43: #{bert_pooler_output.1} parent=1 // pred_check_branch
      %45 = sbr.rel (0) target = $region45
    $region44: #{bert_pooler_output.1} parent=1 // pred_region
      _
    $region45: #{bert_pooler_output.1} parent=1 // pred_fallthru
      _
    // Predicated region
    $region46: #{bert_pooler_output.1} parent=1 // pred_check
      _
    $region47: #{bert_pooler_output.1} parent=1 // pred_check_branch
      %47 = sbr.rel (0) target = $region49
    $region48: #{bert_pooler_output.1} parent=1 // pred_region
      _
    $region49: #{bert_pooler_output.1} parent=1 // pred_fallthru
      _
    // Predicated region
    $region50: #{bert_pooler_output.1} parent=1 // pred_check
      _
    $region51: #{bert_pooler_output.1} parent=1 // pred_check_branch
      %49 = sbr.rel (0) target = $region53
    $region52: #{bert_pooler_output.1} parent=1 // pred_region
      _
    $region53: #{bert_pooler_output.1} parent=1 // pred_fallthru
      _
    // Predicated region
    $region54: #{bert_pooler_output.1} parent=1 // pred_check
      _
    $region55: #{bert_pooler_output.1} parent=1 // pred_check_branch
      %51 = sbr.rel (0) target = $region57
    $region56: #{bert_pooler_output.1} parent=1 // pred_region
      _
    $region57: #{bert_pooler_output.1} parent=1 // pred_fallthru
      _
    // Predicated region
    $region58: #{bert_pooler_output.1} parent=1 // pred_check
      _
    $region59: #{bert_pooler_output.1} parent=1 // pred_check_branch
      %53 = sbr.rel (0) target = $region61
    $region60: #{bert_pooler_output.1} parent=1 // pred_region
      _
    $region61: #{bert_pooler_output.1} parent=1 // pred_fallthru
      _
    // Predicated region
    $region62: #{bert_pooler_output.1} parent=1 // pred_check
      _
    $region63: #{bert_pooler_output.1} parent=1 // pred_check_branch
      %55 = sbr.rel (0) target = $region65
    $region64: #{bert_pooler_output.1} parent=1 // pred_region
      _
    $region65: #{bert_pooler_output.1} parent=1 // pred_fallthru
      _
    // Predicated region
    $region66: #{bert_pooler_output.1} parent=1 // pred_check
      _
    $region67: #{bert_pooler_output.1} parent=1 // pred_check_branch
      %57 = sbr.rel (0) target = $region69
    $region68: #{bert_pooler_output.1} parent=1 // pred_region
      _
    $region69: #{bert_pooler_output.1} parent=1 // pred_fallthru
      _
    // Predicated region
    $region70: #{bert_pooler_output.1} parent=1 // pred_check
      _
    $region71: #{bert_pooler_output.1} parent=1 // pred_check_branch
      %59 = sbr.rel (0) target = $region73
    $region72: #{bert_pooler_output.1} parent=1 // pred_region
      _
    $region73: #{bert_pooler_output.1} parent=1 // pred_fallthru
      _
    %v61 = vld [vmem:[%s0] sm:$0xff]
    %v62 = vld [vmem:[%s0 + $0x8] sm:$0xff]
    %v63 = vld [vmem:[%s1] sm:$0x1]
    %v64 = vld [vmem:[%s1 + $0x1] sm:$0x1]
    %v65 = vld [vmem:[%s2] sm:$0x1]
    %v66 = vld [vmem:[%s3] sm:$0x1]
    %vm67 = vcmask 261120
    %v68 = vsel %vm67, %v61, 0.0
    %69 = vadd.xlane.f32.xlu0 %v68
    %v70 = vpop.xlane.xlu0 %69
    %v71 = vsel %vm67, %v62, 0.0
    %72 = vadd.xlane.f32.xlu0 %v71
    %v73 = vpop.xlane.xlu0 %72
    %v74 = vrcp.pop 32.0
    %v75 = vmul.f32 32.0, %v74
    %v76 = vsub.f32 1.0, %v75
    %v77 = vmul.f32 %v74, %v76
    %v78 = vadd.f32 %v74, %v77
    %vm79 = vweird.f32 %v74
    %v80 = vsel %vm79, %v74, %v78
    %v81 = vmul.f32 %v70, %v80
    %v82 = vmul.f32 %v73, %v80
    %v83 = vsub.f32 %v61, %v81
    %v84 = vsub.f32 %v62, %v82
    %v85 = vmul.f32 %v83, %v83
    %v86 = vmul.f32 %v84, %v84
    %v87 = vsel %vm67, %v85, 0.0
    %88 = vadd.xlane.f32.xlu0 %v87
    %v89 = vpop.xlane.xlu0 %88
    %v90 = vsel %vm67, %v86, 0.0
    %91 = vadd.xlane.f32.xlu0 %v90
    %v92 = vpop.xlane.xlu0 %91
    %v93 = vmul.f32 %v89, %v80
    %v94 = vmul.f32 %v92, %v80
    %v95 = vadd.f32 %v93, 1e-12
    %v96 = vadd.f32 %v94, 1e-12
    %v97 = vrsqrt.pop %v95
    %v98 = vmul.f32 %v97, %v95
    %v99 = vmul.f32 %v98, %v97
    %v100 = vmul.f32 0.5, %v99
    %v101 = vsub.f32 1.5, %v100
    %v102 = vmul.f32 %v97, %v101
    %vm103 = vweird.f32 %v95
    %vm104 = vweird.f32 %v97
    %vm105 = vmor %vm103, %vm104
    %v106 = vsel %vm105, %v97, %v102
    %v107 = vrsqrt.pop %v96
    %v108 = vmul.f32 %v107, %v96
    %v109 = vmul.f32 %v108, %v107
    %v110 = vmul.f32 0.5, %v109
    %v111 = vsub.f32 1.5, %v110
    %v112 = vmul.f32 %v107, %v111
    %vm113 = vweird.f32 %v96
    %vm114 = vweird.f32 %v107
    %vm115 = vmor %vm113, %vm114
    %v116 = vsel %vm115, %v107, %v112
    %v117 = vmul.f32 %v83, %v106
    %v118 = vmul.f32 %v84, %v116
    %v120 = vperm.slane %v65, 0
    %v122 = vmul.f32 %v117, %v120
    %v123 = vmul.f32 %v118, %v120
    %v125 = vperm.slane %v66, 0
    %v127 = vadd.f32 %v122, %v125
    %v128 = vadd.f32 %v123, %v125
    %v129 = vpack.c.bf16 %v128, %v127
    %v130 = vld [vmem:[%s4] sm:$0xf]
    %v131 = vld [vmem:[%s4 + $0x4] sm:$0xf]
    %v132 = vld [vmem:[%s4 + $0x8] sm:$0xf]
    %v133 = vld [vmem:[%s4 + $0xc] sm:$0xf]
    %v134 = vld [vmem:[%s5] sm:$0x1]
    %v136 = vperm.slane %v134, 0
    %v142 = vunpack.c.l.b16 %v130
    %v143 = vunpack.c.l.b16 %v131
    %v144 = vunpack.c.l.b16 %v132
    %v145 = vunpack.c.l.b16 %v133
    %v146 = vpack.c.b16 %v143, %v142
    %v147 = vpack.c.b16 %v145, %v144
    %v151 = vsel %vm67, %v129, 0
    %153 = vmatpush.bf16.msra.mxu0 0
    %154 = vmatpush.bf16.msra.mxu0 0
    %155 = vmatpush.bf16.msra.mxu0 0
    %156 = vmatpush.bf16.msra.mxu0 0
    %157 = vmatpush.bf16.msra.mxu0 0
    %158 = vmatpush.bf16.msra.mxu0 0
    %159 = vmatpush.bf16.msra.mxu0 %v147
    %160 = vmatpush.bf16.msra.mxu0 %v146
    %161 = vmatmul.bf16.gmra.mxu0 %v151
    %v162 = vpop.f32.mrf.mxu0
    %v163 = vadd.f32 %v136, %v162
    %v164 = vpop.f32.mrf.mxu0
    %v165 = vadd.f32 %v136, %v164
    %166 = vdwg.mxu0
    %v167 = vld [vmem:[%s6] sm:$0xf]
    %v168 = vld [vmem:[%s6 + $0x4] sm:$0xf]
    %v169 = vld [vmem:[%s6 + $0x8] sm:$0xf]
    %v170 = vld [vmem:[%s6 + $0xc] sm:$0xf]
    %v171 = vpack.c.bf16 %v163, %v163
    %v172 = vpack.c.bf16 %v165, %v165
    %v174 = vunpack.c.l.b16 %v171
    %v175 = vpack.c.b16 %v174, %v174
    %176 = vrot.lane.b32.xlu0 %v175, 96
    %v177 = vpop.permute.xlu0 %176
    %vm178 = vcmask 130048
    %v180 = vsel %vm178, %v171, 0
    %v183 = vsel %vm178, %v177, 0
    %185 = vmatpush.bf16.xpose.msra.mxu0 0
    %186 = vmatpush.bf16.xpose.msra.mxu0 0
    %187 = vmatpush.bf16.xpose.msra.mxu0 0
    %188 = vmatpush.bf16.xpose.msra.mxu0 0
    %189 = vmatpush.bf16.xpose.msra.mxu0 0
    %190 = vmatpush.bf16.xpose.msra.mxu0 0
    %191 = vmatpush.bf16.xpose.msra.mxu0 0
    %192 = vmatpush.bf16.xpose.msra.mxu0 %v183
    %193 = vmatmul.bf16.gmra.mxu0 %v180
    %v194 = vpop.f32.mrf.mxu0
    %v195 = vadd.f32 0.0, %v194
    %v196 = vpop.f32.mrf.mxu0
    %197 = vdwg.mxu0
    %v199 = vunpack.c.l.b16 %v172
    %v200 = vpack.c.b16 %v199, %v199
    %201 = vrot.lane.b32.xlu0 %v200, 96
    %v202 = vpop.permute.xlu0 %201
    %v204 = vsel %vm178, %v172, 0
    %v207 = vsel %vm178, %v202, 0
    %209 = vmatpush.bf16.xpose.msra.mxu0 0
    %210 = vmatpush.bf16.xpose.msra.mxu0 0
    %211 = vmatpush.bf16.xpose.msra.mxu0 0
    %212 = vmatpush.bf16.xpose.msra.mxu0 0
    %213 = vmatpush.bf16.xpose.msra.mxu0 0
    %214 = vmatpush.bf16.xpose.msra.mxu0 0
    %215 = vmatpush.bf16.xpose.msra.mxu0 0
    %216 = vmatpush.bf16.xpose.msra.mxu0 %v207
    %217 = vmatmul.bf16.gmra.mxu0 %v204
    %v218 = vpop.f32.mrf.mxu0
    %v219 = vadd.f32 0.0, %v218
    %v220 = vpop.f32.mrf.mxu0
    %221 = vdwg.mxu0
    %v222 = vmul.f32 %v195, 0.25
    %v223 = vmul.f32 %v219, 0.25
    %v226 = vperm.slane %v63, 0
    %v227 = vperm.slane %v64, 0
    %v230 = vadd.f32 %v222, %v226
    %v231 = vadd.f32 %v223, %v227
    %vm232 = vcmask 64512
    %v233 = vsel %vm232, %v230, -inf
    %234 = vmax.xlane.f32.xlu0 %v233
    %v235 = vpop.xlane.xlu0 %234
    %v236 = vsel %vm232, %v231, -inf
    %237 = vmax.xlane.f32.xlu0 %v236
    %v238 = vpop.xlane.xlu0 %237
    %v239 = vsub.f32 %v230, %v235
    %v240 = vsub.f32 %v231, %v238
    %v241 = vmul.f32 %v239, 1.442695
    %v242 = vpow.pop %v241
    %v243 = vmul.f32 %v240, 1.442695
    %v244 = vpow.pop %v243
    %v245 = vsel %vm232, %v242, 0.0
    %246 = vadd.xlane.f32.xlu0 %v245
    %v247 = vpop.xlane.xlu0 %246
    %v248 = vsel %vm232, %v244, 0.0
    %249 = vadd.xlane.f32.xlu0 %v248
    %v250 = vpop.xlane.xlu0 %249
    %v251 = vrcp.pop %v247
    %v252 = vmul.f32 %v247, %v251
    %v253 = vsub.f32 1.0, %v252
    %v254 = vmul.f32 %v251, %v253
    %v255 = vadd.f32 %v251, %v254
    %vm256 = vweird.f32 %v247
    %vm257 = vweird.f32 %v251
    %vm258 = vmor %vm256, %vm257
    %v259 = vsel %vm258, %v251, %v255
    %v260 = vand.u32 2147483647, %v247
    %vm261 = vcmp.eq.f32.partialorder %v260, 8.507059e+37
    %v262 = vand.u32 %v247, 2147483648
    %v263 = vor.u32 1.1754944e-38, %v262
    %v264 = vsel %vm261, %v263, %v259
    %v265 = vmul.f32 %v242, %v264
    %v266 = vrcp.pop %v250
    %v267 = vmul.f32 %v250, %v266
    %v268 = vsub.f32 1.0, %v267
    %v269 = vmul.f32 %v266, %v268
    %v270 = vadd.f32 %v266, %v269
    %vm271 = vweird.f32 %v250
    %vm272 = vweird.f32 %v266
    %vm273 = vmor %vm271, %vm272
    %v274 = vsel %vm273, %v266, %v270
    %v275 = vand.u32 2147483647, %v250
    %vm276 = vcmp.eq.f32.partialorder %v275, 8.507059e+37
    %v277 = vand.u32 %v250, 2147483648
    %v278 = vor.u32 1.1754944e-38, %v277
    %v279 = vsel %vm276, %v278, %v274
    %v280 = vmul.f32 %v244, %v279
    %v281 = vpack.c.bf16 %v265, %v265
    %v282 = vpack.c.bf16 %v280, %v280
    %283 = vrot.lane.b32.xlu0 %v175, 64
    %v284 = vpop.permute.xlu0 %283
    %v286 = vsel %vm232, %v281, 0
    %vm288 = vcmask 1043456
    %v290 = vsel %vm288, %v284, 0
    %292 = vmatpush.bf16.msra.mxu0 0
    %293 = vmatpush.bf16.msra.mxu0 0
    %294 = vmatpush.bf16.msra.mxu0 0
    %295 = vmatpush.bf16.msra.mxu0 0
    %296 = vmatpush.bf16.msra.mxu0 0
    %297 = vmatpush.bf16.msra.mxu0 0
    %298 = vmatpush.bf16.msra.mxu0 0
    %299 = vmatpush.bf16.msra.mxu0 %v290
    %300 = vmatmul.bf16.gmra.mxu0 %v286
    %v301 = vpop.f32.mrf.mxu0
    %v302 = vadd.f32 0.0, %v301
    %v303 = vpop.f32.mrf.mxu0
    %304 = vdwg.mxu0
    %305 = vrot.lane.b32.xlu0 %v200, 64
    %v306 = vpop.permute.xlu0 %305
    %v308 = vsel %vm232, %v282, 0
    %v311 = vsel %vm288, %v306, 0
    %313 = vmatpush.bf16.msra.mxu0 0
    %314 = vmatpush.bf16.msra.mxu0 0
    %315 = vmatpush.bf16.msra.mxu0 0
    %316 = vmatpush.bf16.msra.mxu0 0
    %317 = vmatpush.bf16.msra.mxu0 0
    %318 = vmatpush.bf16.msra.mxu0 0
    %319 = vmatpush.bf16.msra.mxu0 0
    %320 = vmatpush.bf16.msra.mxu0 %v311
    %321 = vmatmul.bf16.gmra.mxu0 %v308
    %v322 = vpop.f32.mrf.mxu0
    %v323 = vadd.f32 0.0, %v322
    %v324 = vpop.f32.mrf.mxu0
    %325 = vdwg.mxu0
    %v326 = vpack.c.bf16 %v323, %v302
    %327 = vrot.lane.b32.xlu0 %v175, 112
    %v328 = vpop.permute.xlu0 %327
    %329 = vrot.lane.b32.xlu0 %v175, 80
    %v330 = vpop.permute.xlu0 %329
    %v332 = vsel %vm178, %v328, 0
    %v335 = vsel %vm178, %v330, 0
    %337 = vmatpush.bf16.xpose.msra.mxu0 0
    %338 = vmatpush.bf16.xpose.msra.mxu0 0
    %339 = vmatpush.bf16.xpose.msra.mxu0 0
    %340 = vmatpush.bf16.xpose.msra.mxu0 0
    %341 = vmatpush.bf16.xpose.msra.mxu0 0
    %342 = vmatpush.bf16.xpose.msra.mxu0 0
    %343 = vmatpush.bf16.xpose.msra.mxu0 0
    %344 = vmatpush.bf16.xpose.msra.mxu0 %v335
    %345 = vmatmul.bf16.gmra.mxu0 %v332
    %v346 = vpop.f32.mrf.mxu0
    %v347 = vadd.f32 0.0, %v346
    %v348 = vpop.f32.mrf.mxu0
    %349 = vdwg.mxu0
    %350 = vrot.lane.b32.xlu0 %v200, 112
    %v351 = vpop.permute.xlu0 %350
    %352 = vrot.lane.b32.xlu0 %v200, 80
    %v353 = vpop.permute.xlu0 %352
    %v355 = vsel %vm178, %v351, 0
    %v358 = vsel %vm178, %v353, 0
    %360 = vmatpush.bf16.xpose.msra.mxu0 0
    %361 = vmatpush.bf16.xpose.msra.mxu0 0
    %362 = vmatpush.bf16.xpose.msra.mxu0 0
    %363 = vmatpush.bf16.xpose.msra.mxu0 0
    %364 = vmatpush.bf16.xpose.msra.mxu0 0
    %365 = vmatpush.bf16.xpose.msra.mxu0 0
    %366 = vmatpush.bf16.xpose.msra.mxu0 0
    %367 = vmatpush.bf16.xpose.msra.mxu0 %v358
    %368 = vmatmul.bf16.gmra.mxu0 %v355
    %v369 = vpop.f32.mrf.mxu0
    %v370 = vadd.f32 0.0, %v369
    %v371 = vpop.f32.mrf.mxu0
    %372 = vdwg.mxu0
    %v373 = vmul.f32 %v347, 0.25
    %v374 = vmul.f32 %v370, 0.25
    %v375 = vadd.f32 %v373, %v226
    %v376 = vadd.f32 %v374, %v227
    %v377 = vsel %vm232, %v375, -inf
    %378 = vmax.xlane.f32.xlu0 %v377
    %v379 = vpop.xlane.xlu0 %378
    %v380 = vsel %vm232, %v376, -inf
    %381 = vmax.xlane.f32.xlu0 %v380
    %v382 = vpop.xlane.xlu0 %381
    %v383 = vsub.f32 %v375, %v379
    %v384 = vsub.f32 %v376, %v382
    %v385 = vmul.f32 %v383, 1.442695
    %v386 = vpow.pop %v385
    %v387 = vmul.f32 %v384, 1.442695
    %v388 = vpow.pop %v387
    %v389 = vsel %vm232, %v386, 0.0
    %390 = vadd.xlane.f32.xlu0 %v389
    %v391 = vpop.xlane.xlu0 %390
    %v392 = vsel %vm232, %v388, 0.0
    %393 = vadd.xlane.f32.xlu0 %v392
    %v394 = vpop.xlane.xlu0 %393
    %v395 = vrcp.pop %v391
    %v396 = vmul.f32 %v391, %v395
    %v397 = vsub.f32 1.0, %v396
    %v398 = vmul.f32 %v395, %v397
    %v399 = vadd.f32 %v395, %v398
    %vm400 = vweird.f32 %v391
    %vm401 = vweird.f32 %v395
    %vm402 = vmor %vm400, %vm401
    %v403 = vsel %vm402, %v395, %v399
    %v404 = vand.u32 2147483647, %v391
    %vm405 = vcmp.eq.f32.partialorder %v404, 8.507059e+37
    %v406 = vand.u32 %v391, 2147483648
    %v407 = vor.u32 1.1754944e-38, %v406
    %v408 = vsel %vm405, %v407, %v403
    %v409 = vmul.f32 %v386, %v408
    %v410 = vrcp.pop %v394
    %v411 = vmul.f32 %v394, %v410
    %v412 = vsub.f32 1.0, %v411
    %v413 = vmul.f32 %v410, %v412
    %v414 = vadd.f32 %v410, %v413
    %vm415 = vweird.f32 %v394
    %vm416 = vweird.f32 %v410
    %vm417 = vmor %vm415, %vm416
    %v418 = vsel %vm417, %v410, %v414
    %v419 = vand.u32 2147483647, %v394
    %vm420 = vcmp.eq.f32.partialorder %v419, 8.507059e+37
    %v421 = vand.u32 %v394, 2147483648
    %v422 = vor.u32 1.1754944e-38, %v421
    %v423 = vsel %vm420, %v422, %v418
    %v424 = vmul.f32 %v388, %v423
    %v425 = vpack.c.bf16 %v409, %v409
    %v426 = vpack.c.bf16 %v424, %v424
    %427 = vrot.lane.b32.xlu0 %v175, 48
    %v428 = vpop.permute.xlu0 %427
    %v430 = vsel %vm232, %v425, 0
    %v433 = vsel %vm288, %v428, 0
    %435 = vmatpush.bf16.msra.mxu0 0
    %436 = vmatpush.bf16.msra.mxu0 0
    %437 = vmatpush.bf16.msra.mxu0 0
    %438 = vmatpush.bf16.msra.mxu0 0
    %439 = vmatpush.bf16.msra.mxu0 0
    %440 = vmatpush.bf16.msra.mxu0 0
    %441 = vmatpush.bf16.msra.mxu0 0
    %442 = vmatpush.bf16.msra.mxu0 %v433
    %443 = vmatmul.bf16.gmra.mxu0 %v430
    %v444 = vpop.f32.mrf.mxu0
    %v445 = vadd.f32 0.0, %v444
    %v446 = vpop.f32.mrf.mxu0
    %447 = vdwg.mxu0
    %448 = vrot.lane.b32.xlu0 %v200, 48
    %v449 = vpop.permute.xlu0 %448
    %v451 = vsel %vm232, %v426, 0
    %v454 = vsel %vm288, %v449, 0
    %456 = vmatpush.bf16.msra.mxu0 0
    %457 = vmatpush.bf16.msra.mxu0 0
    %458 = vmatpush.bf16.msra.mxu0 0
    %459 = vmatpush.bf16.msra.mxu0 0
    %460 = vmatpush.bf16.msra.mxu0 0
    %461 = vmatpush.bf16.msra.mxu0 0
    %462 = vmatpush.bf16.msra.mxu0 0
    %463 = vmatpush.bf16.msra.mxu0 %v454
    %464 = vmatmul.bf16.gmra.mxu0 %v451
    %v465 = vpop.f32.mrf.mxu0
    %v466 = vadd.f32 0.0, %v465
    %v467 = vpop.f32.mrf.mxu0
    %468 = vdwg.mxu0
    %v469 = vpack.c.bf16 %v466, %v445
    %v472 = vunpack.c.l.b16 %v169
    %v473 = vunpack.c.l.b16 %v170
    %v474 = vpack.c.b16 %v473, %v472
    %v477 = vsel %vm178, %v469, 0
    %479 = vmatpush.bf16.msra.mxu0 0
    %480 = vmatpush.bf16.msra.mxu0 0
    %481 = vmatpush.bf16.msra.mxu0 0
    %482 = vmatpush.bf16.msra.mxu0 0
    %483 = vmatpush.bf16.msra.mxu0 0
    %484 = vmatpush.bf16.msra.mxu0 0
    %485 = vmatpush.bf16.msra.mxu0 0
    %486 = vmatpush.bf16.msra.mxu0 %v474
    %487 = vmatmul.bf16.gmra.mxu0 %v477
    %v488 = vpop.f32.mrf.mxu0
    %v489 = vadd.f32 0.0, %v488
    %v490 = vpop.f32.mrf.mxu0
    %v491 = vadd.f32 0.0, %v490
    %492 = vdwg.mxu0
    %v495 = vunpack.c.l.b16 %v167
    %v496 = vunpack.c.l.b16 %v168
    %v497 = vpack.c.b16 %v496, %v495
    %v500 = vsel %vm178, %v326, 0
    %502 = vmatpush.bf16.msra.mxu0 0
    %503 = vmatpush.bf16.msra.mxu0 0
    %504 = vmatpush.bf16.msra.mxu0 0
    %505 = vmatpush.bf16.msra.mxu0 0
    %506 = vmatpush.bf16.msra.mxu0 0
    %507 = vmatpush.bf16.msra.mxu0 0
    %508 = vmatpush.bf16.msra.mxu0 0
    %509 = vmatpush.bf16.msra.mxu0 %v497
    %510 = vmatmul.bf16.gmra.mxu0 %v500
    %v511 = vpop.f32.mrf.mxu0
    %v512 = vadd.f32 %v489, %v511
    %v513 = vpop.f32.mrf.mxu0
    %v514 = vadd.f32 %v491, %v513
    %515 = vdwg.mxu0
    %v516 = vld [vmem:[%s7] sm:$0x1]
    %v518 = vperm.slane %v516, 0
    %v520 = vadd.f32 %v512, %v518
    %v521 = vadd.f32 %v514, %v518
    %v522 = vadd.f32 %v520, %v127
    %v523 = vadd.f32 %v521, %v128
    %v524 = vld [vmem:[%s8] sm:$0x1]
    %v525 = vld [vmem:[%s9] sm:$0x1]
    %v526 = vsel %vm67, %v522, 0.0
    %527 = vadd.xlane.f32.xlu0 %v526
    %v528 = vpop.xlane.xlu0 %527
    %v529 = vsel %vm67, %v523, 0.0
    %530 = vadd.xlane.f32.xlu0 %v529
    %v531 = vpop.xlane.xlu0 %530
    %v532 = vmul.f32 %v528, %v80
    %v533 = vmul.f32 %v531, %v80
    %v534 = vsub.f32 %v522, %v532
    %v535 = vsub.f32 %v523, %v533
    %v536 = vmul.f32 %v534, %v534
    %v537 = vmul.f32 %v535, %v535
    %v538 = vsel %vm67, %v536, 0.0
    %539 = vadd.xlane.f32.xlu0 %v538
    %v540 = vpop.xlane.xlu0 %539
    %v541 = vsel %vm67, %v537, 0.0
    %542 = vadd.xlane.f32.xlu0 %v541
    %v543 = vpop.xlane.xlu0 %542
    %v544 = vmul.f32 %v540, %v80
    %v545 = vmul.f32 %v543, %v80
    %v546 = vadd.f32 %v544, 1e-12
    %v547 = vadd.f32 %v545, 1e-12
    %v548 = vrsqrt.pop %v546
    %v549 = vmul.f32 %v548, %v546
    %v550 = vmul.f32 %v549, %v548
    %v551 = vmul.f32 0.5, %v550
    %v552 = vsub.f32 1.5, %v551
    %v553 = vmul.f32 %v548, %v552
    %vm554 = vweird.f32 %v546
    %vm555 = vweird.f32 %v548
    %vm556 = vmor %vm554, %vm555
    %v557 = vsel %vm556, %v548, %v553
    %v558 = vrsqrt.pop %v547
    %v559 = vmul.f32 %v558, %v547
    %v560 = vmul.f32 %v559, %v558
    %v561 = vmul.f32 0.5, %v560
    %v562 = vsub.f32 1.5, %v561
    %v563 = vmul.f32 %v558, %v562
    %vm564 = vweird.f32 %v547
    %vm565 = vweird.f32 %v558
    %vm566 = vmor %vm564, %vm565
    %v567 = vsel %vm566, %v558, %v563
    %v568 = vmul.f32 %v534, %v557
    %v569 = vmul.f32 %v535, %v567
    %v571 = vperm.slane %v524, 0
    %v573 = vmul.f32 %v568, %v571
    %v574 = vmul.f32 %v569, %v571
    %v576 = vperm.slane %v525, 0
    %v578 = vadd.f32 %v573, %v576
    %v579 = vadd.f32 %v574, %v576
    %v580 = vpack.c.bf16 %v579, %v578
    %v581 = vld [vmem:[%s10] sm:$0xf]
    %v582 = vld [vmem:[%s10 + $0x4] sm:$0xf]
    %v583 = vld [vmem:[%s10 + $0x8] sm:$0xf]
    %v584 = vld [vmem:[%s10 + $0xc] sm:$0xf]
    %v585 = vld [vmem:[%s11] sm:$0x1]
    %v587 = vperm.slane %v585, 0
    %v593 = vunpack.c.l.b16 %v581
    %v594 = vunpack.c.l.b16 %v582
    %v595 = vunpack.c.l.b16 %v583
    %v596 = vunpack.c.l.b16 %v584
    %v597 = vpack.c.b16 %v594, %v593
    %v598 = vpack.c.b16 %v596, %v595
    %v602 = vsel %vm67, %v580, 0
    %604 = vmatpush.bf16.msra.mxu0 0
    %605 = vmatpush.bf16.msra.mxu0 0
    %606 = vmatpush.bf16.msra.mxu0 0
    %607 = vmatpush.bf16.msra.mxu0 0
    %608 = vmatpush.bf16.msra.mxu0 0
    %609 = vmatpush.bf16.msra.mxu0 0
    %610 = vmatpush.bf16.msra.mxu0 %v598
    %611 = vmatpush.bf16.msra.mxu0 %v597
    %612 = vmatmul.bf16.gmra.mxu0 %v602
    %v613 = vpop.f32.mrf.mxu0
    %v614 = vadd.f32 %v587, %v613
    %v615 = vpop.f32.mrf.mxu0
    %v616 = vadd.f32 %v587, %v615
    %617 = vdwg.mxu0
    %v618 = vmul.f32 %v614, 0.5
    %v619 = vmul.f32 %v616, 0.5
    %v620 = vmul.f32 %v614, 0.70710677
    %v621 = vmul.f32 %v616, 0.70710677
    %v622 = vmul.f32 %v620, %v620
    %v623 = vmin.f32 16.0, %v622
    %v624 = vmul.f32 %v623, 2.1237322e-06
    %v625 = vadd.f32 %v624, 0.00028619796
    %v626 = vmul.f32 %v623, %v625
    %v627 = vadd.f32 %v626, 0.0036580483
    %v628 = vmul.f32 %v623, %v627
    %v629 = vadd.f32 %v628, 0.05243302
    %v630 = vmul.f32 %v623, %v629
    %v631 = vadd.f32 %v630, 0.18741608
    %v632 = vmul.f32 %v623, %v631
    %v633 = vadd.f32 %v632, 1.1283791
    %v634 = vmul.f32 %v620, %v633
    %v635 = vmul.f32 %v623, 3.8918573e-05
    %v636 = vadd.f32 %v635, 0.001143296
    %v637 = vmul.f32 %v623, %v636
    %v638 = vadd.f32 %v637, 0.014752088
    %v639 = vmul.f32 %v623, %v638
    %v640 = vadd.f32 %v639, 0.112945676
    %v641 = vmul.f32 %v623, %v640
    %v642 = vadd.f32 %v641, 0.4994258
    %v643 = vmul.f32 %v623, %v642
    %v644 = vadd.f32 %v643, 1.0
    %v645 = vrcp.pop %v644
    %v646 = vmul.f32 %v644, %v645
    %v647 = vsub.f32 1.0, %v646
    %v648 = vmul.f32 %v645, %v647
    %v649 = vadd.f32 %v645, %v648
    %vm650 = vweird.f32 %v644
    %vm651 = vweird.f32 %v645
    %vm652 = vmor %vm650, %vm651
    %v653 = vsel %vm652, %v645, %v649
    %v654 = vand.u32 2147483647, %v644
    %vm655 = vcmp.eq.f32.partialorder %v654, 8.507059e+37
    %v656 = vand.u32 %v644, 2147483648
    %v657 = vor.u32 1.1754944e-38, %v656
    %v658 = vsel %vm655, %v657, %v653
    %v659 = vmul.f32 %v634, %v658
    %v660 = vmin.f32 %v659, 1.0
    %v661 = vmax.f32 %v660, -1.0
    %v662 = vmul.f32 %v621, %v621
    %v663 = vmin.f32 16.0, %v662
    %v664 = vmul.f32 %v663, 2.1237322e-06
    %v665 = vadd.f32 %v664, 0.00028619796
    %v666 = vmul.f32 %v663, %v665
    %v667 = vadd.f32 %v666, 0.0036580483
    %v668 = vmul.f32 %v663, %v667
    %v669 = vadd.f32 %v668, 0.05243302
    %v670 = vmul.f32 %v663, %v669
    %v671 = vadd.f32 %v670, 0.18741608
    %v672 = vmul.f32 %v663, %v671
    %v673 = vadd.f32 %v672, 1.1283791
    %v674 = vmul.f32 %v621, %v673
    %v675 = vmul.f32 %v663, 3.8918573e-05
    %v676 = vadd.f32 %v675, 0.001143296
    %v677 = vmul.f32 %v663, %v676
    %v678 = vadd.f32 %v677, 0.014752088
    %v679 = vmul.f32 %v663, %v678
    %v680 = vadd.f32 %v679, 0.112945676
    %v681 = vmul.f32 %v663, %v680
    %v682 = vadd.f32 %v681, 0.4994258
    %v683 = vmul.f32 %v663, %v682
    %v684 = vadd.f32 %v683, 1.0
    %v685 = vrcp.pop %v684
    %v686 = vmul.f32 %v684, %v685
    %v687 = vsub.f32 1.0, %v686
    %v688 = vmul.f32 %v685, %v687
    %v689 = vadd.f32 %v685, %v688
    %vm690 = vweird.f32 %v684
    %vm691 = vweird.f32 %v685
    %vm692 = vmor %vm690, %vm691
    %v693 = vsel %vm692, %v685, %v689
    %v694 = vand.u32 2147483647, %v684
    %vm695 = vcmp.eq.f32.partialorder %v694, 8.507059e+37
    %v696 = vand.u32 %v684, 2147483648
    %v697 = vor.u32 1.1754944e-38, %v696
    %v698 = vsel %vm695, %v697, %v693
    %v699 = vmul.f32 %v674, %v698
    %v700 = vmin.f32 %v699, 1.0
    %v701 = vmax.f32 %v700, -1.0
    %v702 = vadd.f32 %v661, 1.0
    %v703 = vadd.f32 %v701, 1.0
    %v704 = vmul.f32 %v618, %v702
    %v705 = vmul.f32 %v619, %v703
    %v706 = vpack.c.bf16 %v705, %v704
    %v707 = vld [vmem:[%s12] sm:$0xf]
    %v708 = vld [vmem:[%s12 + $0x4] sm:$0xf]
    %v709 = vld [vmem:[%s12 + $0x8] sm:$0xf]
    %v710 = vld [vmem:[%s12 + $0xc] sm:$0xf]
    %v711 = vld [vmem:[%s12 + $0x10] sm:$0xf]
    %v712 = vld [vmem:[%s12 + $0x14] sm:$0xf]
    %v713 = vld [vmem:[%s12 + $0x18] sm:$0xf]
    %v714 = vld [vmem:[%s12 + $0x1c] sm:$0xf]
    %v715 = vld [vmem:[%s13] sm:$0x1]
    %v717 = vperm.slane %v715, 0
    %v727 = vunpack.c.l.b16 %v707
    %v728 = vunpack.c.l.b16 %v708
    %v729 = vunpack.c.l.b16 %v709
    %v730 = vunpack.c.l.b16 %v710
    %v731 = vunpack.c.l.b16 %v711
    %v732 = vunpack.c.l.b16 %v712
    %v733 = vunpack.c.l.b16 %v713
    %v734 = vunpack.c.l.b16 %v714
    %v735 = vpack.c.b16 %v728, %v727
    %v736 = vpack.c.b16 %v730, %v729
    %v737 = vpack.c.b16 %v732, %v731
    %v738 = vpack.c.b16 %v734, %v733
    %vm743 = vcmask 523264
    %v745 = vsel %vm743, %v706, 0
    %747 = vmatpush.bf16.msra.mxu0 0
    %748 = vmatpush.bf16.msra.mxu0 0
    %749 = vmatpush.bf16.msra.mxu0 0
    %750 = vmatpush.bf16.msra.mxu0 0
    %751 = vmatpush.bf16.msra.mxu0 %v738
    %752 = vmatpush.bf16.msra.mxu0 %v737
    %753 = vmatpush.bf16.msra.mxu0 %v736
    %754 = vmatpush.bf16.msra.mxu0 %v735
    %755 = vmatmul.bf16.gmra.mxu0 %v745
    %v756 = vpop.f32.mrf.mxu0
    %v757 = vadd.f32 %v717, %v756
    %v758 = vpop.f32.mrf.mxu0
    %v759 = vadd.f32 %v717, %v758
    %760 = vdwg.mxu0
    %v761 = vadd.f32 %v757, %v578
    %v762 = vadd.f32 %v759, %v579
    %v763 = vld [vmem:[%s14] sm:$0x1]
    %v764 = vld [vmem:[%s15] sm:$0x1]
    %v765 = vsel %vm67, %v761, 0.0
    %766 = vadd.xlane.f32.xlu0 %v765
    %v767 = vpop.xlane.xlu0 %766
    %v768 = vsel %vm67, %v762, 0.0
    %769 = vadd.xlane.f32.xlu0 %v768
    %v770 = vpop.xlane.xlu0 %769
    %v771 = vmul.f32 %v767, %v80
    %v772 = vmul.f32 %v770, %v80
    %v773 = vsub.f32 %v761, %v771
    %v774 = vsub.f32 %v762, %v772
    %v775 = vmul.f32 %v773, %v773
    %v776 = vmul.f32 %v774, %v774
    %v777 = vsel %vm67, %v775, 0.0
    %778 = vadd.xlane.f32.xlu0 %v777
    %v779 = vpop.xlane.xlu0 %778
    %v780 = vsel %vm67, %v776, 0.0
    %781 = vadd.xlane.f32.xlu0 %v780
    %v782 = vpop.xlane.xlu0 %781
    %v783 = vmul.f32 %v779, %v80
    %v784 = vmul.f32 %v782, %v80
    %v785 = vadd.f32 %v783, 1e-12
    %v786 = vadd.f32 %v784, 1e-12
    %v787 = vrsqrt.pop %v785
    %v788 = vmul.f32 %v787, %v785
    %v789 = vmul.f32 %v788, %v787
    %v790 = vmul.f32 0.5, %v789
    %v791 = vsub.f32 1.5, %v790
    %v792 = vmul.f32 %v787, %v791
    %vm793 = vweird.f32 %v785
    %vm794 = vweird.f32 %v787
    %vm795 = vmor %vm793, %vm794
    %v796 = vsel %vm795, %v787, %v792
    %v797 = vrsqrt.pop %v786
    %v798 = vmul.f32 %v797, %v786
    %v799 = vmul.f32 %v798, %v797
    %v800 = vmul.f32 0.5, %v799
    %v801 = vsub.f32 1.5, %v800
    %v802 = vmul.f32 %v797, %v801
    %vm803 = vweird.f32 %v786
    %vm804 = vweird.f32 %v797
    %vm805 = vmor %vm803, %vm804
    %v806 = vsel %vm805, %v797, %v802
    %v807 = vmul.f32 %v773, %v796
    %v808 = vmul.f32 %v774, %v806
    %v810 = vperm.slane %v763, 0
    %v812 = vmul.f32 %v807, %v810
    %v813 = vmul.f32 %v808, %v810
    %v815 = vperm.slane %v764, 0
    %v817 = vadd.f32 %v812, %v815
    %v818 = vadd.f32 %v813, %v815
    %v819 = vpack.c.bf16 %v818, %v817
    %s820 = scalar_lea.vmem %s4, 16
    %v821 = vld [vmem:[%s820] sm:$0xf]
    %v822 = vld [vmem:[%s820 + $0x4] sm:$0xf]
    %v823 = vld [vmem:[%s820 + $0x8] sm:$0xf]
    %v824 = vld [vmem:[%s820 + $0xc] sm:$0xf]
    %s825 = scalar_lea.vmem %s5, 1
    %v826 = vld [vmem:[%s825] sm:$0x1]
    %v828 = vperm.slane %v826, 0
    %v834 = vunpack.c.l.b16 %v821
    %v835 = vunpack.c.l.b16 %v822
    %v836 = vunpack.c.l.b16 %v823
    %v837 = vunpack.c.l.b16 %v824
    %v838 = vpack.c.b16 %v835, %v834
    %v839 = vpack.c.b16 %v837, %v836
    %v843 = vsel %vm67, %v819, 0
    %845 = vmatpush.bf16.msra.mxu0 0
    %846 = vmatpush.bf16.msra.mxu0 0
    %847 = vmatpush.bf16.msra.mxu0 0
    %848 = vmatpush.bf16.msra.mxu0 0
    %849 = vmatpush.bf16.msra.mxu0 0
    %850 = vmatpush.bf16.msra.mxu0 0
    %851 = vmatpush.bf16.msra.mxu0 %v839
    %852 = vmatpush.bf16.msra.mxu0 %v838
    %853 = vmatmul.bf16.gmra.mxu0 %v843
    %v854 = vpop.f32.mrf.mxu0
    %v855 = vadd.f32 %v828, %v854
    %v856 = vpop.f32.mrf.mxu0
    %v857 = vadd.f32 %v828, %v856
    %858 = vdwg.mxu0
    %s859 = scalar_lea.vmem %s6, 16
    %v860 = vld [vmem:[%s859] sm:$0xf]
    %v861 = vld [vmem:[%s859 + $0x4] sm:$0xf]
    %v862 = vld [vmem:[%s859 + $0x8] sm:$0xf]
    %v863 = vld [vmem:[%s859 + $0xc] sm:$0xf]
    %v864 = vpack.c.bf16 %v855, %v855
    %v865 = vpack.c.bf16 %v857, %v857
    %v867 = vunpack.c.l.b16 %v864
    %v868 = vpack.c.b16 %v867, %v867
    %869 = vrot.lane.b32.xlu0 %v868, 96
    %v870 = vpop.permute.xlu0 %869
    %v872 = vsel %vm178, %v864, 0
    %v875 = vsel %vm178, %v870, 0
    %877 = vmatpush.bf16.xpose.msra.mxu0 0
    %878 = vmatpush.bf16.xpose.msra.mxu0 0
    %879 = vmatpush.bf16.xpose.msra.mxu0 0
    %880 = vmatpush.bf16.xpose.msra.mxu0 0
    %881 = vmatpush.bf16.xpose.msra.mxu0 0
    %882 = vmatpush.bf16.xpose.msra.mxu0 0
    %883 = vmatpush.bf16.xpose.msra.mxu0 0
    %884 = vmatpush.bf16.xpose.msra.mxu0 %v875
    %885 = vmatmul.bf16.gmra.mxu0 %v872
    %v886 = vpop.f32.mrf.mxu0
    %v887 = vadd.f32 0.0, %v886
    %v888 = vpop.f32.mrf.mxu0
    %889 = vdwg.mxu0
    %v891 = vunpack.c.l.b16 %v865
    %v892 = vpack.c.b16 %v891, %v891
    %893 = vrot.lane.b32.xlu0 %v892, 96
    %v894 = vpop.permute.xlu0 %893
    %v896 = vsel %vm178, %v865, 0
    %v899 = vsel %vm178, %v894, 0
    %901 = vmatpush.bf16.xpose.msra.mxu0 0
    %902 = vmatpush.bf16.xpose.msra.mxu0 0
    %903 = vmatpush.bf16.xpose.msra.mxu0 0
    %904 = vmatpush.bf16.xpose.msra.mxu0 0
    %905 = vmatpush.bf16.xpose.msra.mxu0 0
    %906 = vmatpush.bf16.xpose.msra.mxu0 0
    %907 = vmatpush.bf16.xpose.msra.mxu0 0
    %908 = vmatpush.bf16.xpose.msra.mxu0 %v899
    %909 = vmatmul.bf16.gmra.mxu0 %v896
    %v910 = vpop.f32.mrf.mxu0
    %v911 = vadd.f32 0.0, %v910
    %v912 = vpop.f32.mrf.mxu0
    %913 = vdwg.mxu0
    %v914 = vmul.f32 %v887, 0.25
    %v915 = vmul.f32 %v911, 0.25
    %v916 = vadd.f32 %v914, %v226
    %v917 = vadd.f32 %v915, %v227
    %v918 = vsel %vm232, %v916, -inf
    %919 = vmax.xlane.f32.xlu0 %v918
    %v920 = vpop.xlane.xlu0 %919
    %v921 = vsel %vm232, %v917, -inf
    %922 = vmax.xlane.f32.xlu0 %v921
    %v923 = vpop.xlane.xlu0 %922
    %v924 = vsub.f32 %v916, %v920
    %v925 = vsub.f32 %v917, %v923
    %v926 = vmul.f32 %v924, 1.442695
    %v927 = vpow.pop %v926
    %v928 = vmul.f32 %v925, 1.442695
    %v929 = vpow.pop %v928
    %v930 = vsel %vm232, %v927, 0.0
    %931 = vadd.xlane.f32.xlu0 %v930
    %v932 = vpop.xlane.xlu0 %931
    %v933 = vsel %vm232, %v929, 0.0
    %934 = vadd.xlane.f32.xlu0 %v933
    %v935 = vpop.xlane.xlu0 %934
    %v936 = vrcp.pop %v932
    %v937 = vmul.f32 %v932, %v936
    %v938 = vsub.f32 1.0, %v937
    %v939 = vmul.f32 %v936, %v938
    %v940 = vadd.f32 %v936, %v939
    %vm941 = vweird.f32 %v932
    %vm942 = vweird.f32 %v936
    %vm943 = vmor %vm941, %vm942
    %v944 = vsel %vm943, %v936, %v940
    %v945 = vand.u32 2147483647, %v932
    %vm946 = vcmp.eq.f32.partialorder %v945, 8.507059e+37
    %v947 = vand.u32 %v932, 2147483648
    %v948 = vor.u32 1.1754944e-38, %v947
    %v949 = vsel %vm946, %v948, %v944
    %v950 = vmul.f32 %v927, %v949
    %v951 = vrcp.pop %v935
    %v952 = vmul.f32 %v935, %v951
    %v953 = vsub.f32 1.0, %v952
    %v954 = vmul.f32 %v951, %v953
    %v955 = vadd.f32 %v951, %v954
    %vm956 = vweird.f32 %v935
    %vm957 = vweird.f32 %v951
    %vm958 = vmor %vm956, %vm957
    %v959 = vsel %vm958, %v951, %v955
    %v960 = vand.u32 2147483647, %v935
    %vm961 = vcmp.eq.f32.partialorder %v960, 8.507059e+37
    %v962 = vand.u32 %v935, 2147483648
    %v963 = vor.u32 1.1754944e-38, %v962
    %v964 = vsel %vm961, %v963, %v959
    %v965 = vmul.f32 %v929, %v964
    %v966 = vpack.c.bf16 %v950, %v950
    %v967 = vpack.c.bf16 %v965, %v965
    %968 = vrot.lane.b32.xlu0 %v868, 64
    %v969 = vpop.permute.xlu0 %968
    %v971 = vsel %vm232, %v966, 0
    %v974 = vsel %vm288, %v969, 0
    %976 = vmatpush.bf16.msra.mxu0 0
    %977 = vmatpush.bf16.msra.mxu0 0
    %978 = vmatpush.bf16.msra.mxu0 0
    %979 = vmatpush.bf16.msra.mxu0 0
    %980 = vmatpush.bf16.msra.mxu0 0
    %981 = vmatpush.bf16.msra.mxu0 0
    %982 = vmatpush.bf16.msra.mxu0 0
    %983 = vmatpush.bf16.msra.mxu0 %v974
    %984 = vmatmul.bf16.gmra.mxu0 %v971
    %v985 = vpop.f32.mrf.mxu0
    %v986 = vadd.f32 0.0, %v985
    %v987 = vpop.f32.mrf.mxu0
    %988 = vdwg.mxu0
    %989 = vrot.lane.b32.xlu0 %v892, 64
    %v990 = vpop.permute.xlu0 %989
    %v992 = vsel %vm232, %v967, 0
    %v995 = vsel %vm288, %v990, 0
    %997 = vmatpush.bf16.msra.mxu0 0
    %998 = vmatpush.bf16.msra.mxu0 0
    %999 = vmatpush.bf16.msra.mxu0 0
    %1000 = vmatpush.bf16.msra.mxu0 0
    %1001 = vmatpush.bf16.msra.mxu0 0
    %1002 = vmatpush.bf16.msra.mxu0 0
    %1003 = vmatpush.bf16.msra.mxu0 0
    %1004 = vmatpush.bf16.msra.mxu0 %v995
    %1005 = vmatmul.bf16.gmra.mxu0 %v992
    %v1006 = vpop.f32.mrf.mxu0
    %v1007 = vadd.f32 0.0, %v1006
    %v1008 = vpop.f32.mrf.mxu0
    %1009 = vdwg.mxu0
    %v1010 = vpack.c.bf16 %v1007, %v986
    %1011 = vrot.lane.b32.xlu0 %v868, 112
    %v1012 = vpop.permute.xlu0 %1011
    %1013 = vrot.lane.b32.xlu0 %v868, 80
    %v1014 = vpop.permute.xlu0 %1013
    %v1016 = vsel %vm178, %v1012, 0
    %v1019 = vsel %vm178, %v1014, 0
    %1021 = vmatpush.bf16.xpose.msra.mxu0 0
    %1022 = vmatpush.bf16.xpose.msra.mxu0 0
    %1023 = vmatpush.bf16.xpose.msra.mxu0 0
    %1024 = vmatpush.bf16.xpose.msra.mxu0 0
    %1025 = vmatpush.bf16.xpose.msra.mxu0 0
    %1026 = vmatpush.bf16.xpose.msra.mxu0 0
    %1027 = vmatpush.bf16.xpose.msra.mxu0 0
    %1028 = vmatpush.bf16.xpose.msra.mxu0 %v1019
    %1029 = vmatmul.bf16.gmra.mxu0 %v1016
    %v1030 = vpop.f32.mrf.mxu0
    %v1031 = vadd.f32 0.0, %v1030
    %v1032 = vpop.f32.mrf.mxu0
    %1033 = vdwg.mxu0
    %1034 = vrot.lane.b32.xlu0 %v892, 112
    %v1035 = vpop.permute.xlu0 %1034
    %1036 = vrot.lane.b32.xlu0 %v892, 80
    %v1037 = vpop.permute.xlu0 %1036
    %v1039 = vsel %vm178, %v1035, 0
    %v1042 = vsel %vm178, %v1037, 0
    %1044 = vmatpush.bf16.xpose.msra.mxu0 0
    %1045 = vmatpush.bf16.xpose.msra.mxu0 0
    %1046 = vmatpush.bf16.xpose.msra.mxu0 0
    %1047 = vmatpush.bf16.xpose.msra.mxu0 0
    %1048 = vmatpush.bf16.xpose.msra.mxu0 0
    %1049 = vmatpush.bf16.xpose.msra.mxu0 0
    %1050 = vmatpush.bf16.xpose.msra.mxu0 0
    %1051 = vmatpush.bf16.xpose.msra.mxu0 %v1042
    %1052 = vmatmul.bf16.gmra.mxu0 %v1039
    %v1053 = vpop.f32.mrf.mxu0
    %v1054 = vadd.f32 0.0, %v1053
    %v1055 = vpop.f32.mrf.mxu0
    %1056 = vdwg.mxu0
    %v1057 = vmul.f32 %v1031, 0.25
    %v1058 = vmul.f32 %v1054, 0.25
    %v1059 = vadd.f32 %v1057, %v226
    %v1060 = vadd.f32 %v1058, %v227
    %v1061 = vsel %vm232, %v1059, -inf
    %1062 = vmax.xlane.f32.xlu0 %v1061
    %v1063 = vpop.xlane.xlu0 %1062
    %v1064 = vsel %vm232, %v1060, -inf
    %1065 = vmax.xlane.f32.xlu0 %v1064
    %v1066 = vpop.xlane.xlu0 %1065
    %v1067 = vsub.f32 %v1059, %v1063
    %v1068 = vsub.f32 %v1060, %v1066
    %v1069 = vmul.f32 %v1067, 1.442695
    %v1070 = vpow.pop %v1069
    %v1071 = vmul.f32 %v1068, 1.442695
    %v1072 = vpow.pop %v1071
    %v1073 = vsel %vm232, %v1070, 0.0
    %1074 = vadd.xlane.f32.xlu0 %v1073
    %v1075 = vpop.xlane.xlu0 %1074
    %v1076 = vsel %vm232, %v1072, 0.0
    %1077 = vadd.xlane.f32.xlu0 %v1076
    %v1078 = vpop.xlane.xlu0 %1077
    %v1079 = vrcp.pop %v1075
    %v1080 = vmul.f32 %v1075, %v1079
    %v1081 = vsub.f32 1.0, %v1080
    %v1082 = vmul.f32 %v1079, %v1081
    %v1083 = vadd.f32 %v1079, %v1082
    %vm1084 = vweird.f32 %v1075
    %vm1085 = vweird.f32 %v1079
    %vm1086 = vmor %vm1084, %vm1085
    %v1087 = vsel %vm1086, %v1079, %v1083
    %v1088 = vand.u32 2147483647, %v1075
    %vm1089 = vcmp.eq.f32.partialorder %v1088, 8.507059e+37
    %v1090 = vand.u32 %v1075, 2147483648
    %v1091 = vor.u32 1.1754944e-38, %v1090
    %v1092 = vsel %vm1089, %v1091, %v1087
    %v1093 = vmul.f32 %v1070, %v1092
    %v1094 = vrcp.pop %v1078
    %v1095 = vmul.f32 %v1078, %v1094
    %v1096 = vsub.f32 1.0, %v1095
    %v1097 = vmul.f32 %v1094, %v1096
    %v1098 = vadd.f32 %v1094, %v1097
    %vm1099 = vweird.f32 %v1078
    %vm1100 = vweird.f32 %v1094
    %vm1101 = vmor %vm1099, %vm1100
    %v1102 = vsel %vm1101, %v1094, %v1098
    %v1103 = vand.u32 2147483647, %v1078
    %vm1104 = vcmp.eq.f32.partialorder %v1103, 8.507059e+37
    %v1105 = vand.u32 %v1078, 2147483648
    %v1106 = vor.u32 1.1754944e-38, %v1105
    %v1107 = vsel %vm1104, %v1106, %v1102
    %v1108 = vmul.f32 %v1072, %v1107
    %v1109 = vpack.c.bf16 %v1093, %v1093
    %v1110 = vpack.c.bf16 %v1108, %v1108
    %1111 = vrot.lane.b32.xlu0 %v868, 48
    %v1112 = vpop.permute.xlu0 %1111
    %v1114 = vsel %vm232, %v1109, 0
    %v1117 = vsel %vm288, %v1112, 0
    %1119 = vmatpush.bf16.msra.mxu0 0
    %1120 = vmatpush.bf16.msra.mxu0 0
    %1121 = vmatpush.bf16.msra.mxu0 0
    %1122 = vmatpush.bf16.msra.mxu0 0
    %1123 = vmatpush.bf16.msra.mxu0 0
    %1124 = vmatpush.bf16.msra.mxu0 0
    %1125 = vmatpush.bf16.msra.mxu0 0
    %1126 = vmatpush.bf16.msra.mxu0 %v1117
    %1127 = vmatmul.bf16.gmra.mxu0 %v1114
    %v1128 = vpop.f32.mrf.mxu0
    %v1129 = vadd.f32 0.0, %v1128
    %v1130 = vpop.f32.mrf.mxu0
    %1131 = vdwg.mxu0
    %1132 = vrot.lane.b32.xlu0 %v892, 48
    %v1133 = vpop.permute.xlu0 %1132
    %v1135 = vsel %vm232, %v1110, 0
    %v1138 = vsel %vm288, %v1133, 0
    %1140 = vmatpush.bf16.msra.mxu0 0
    %1141 = vmatpush.bf16.msra.mxu0 0
    %1142 = vmatpush.bf16.msra.mxu0 0
    %1143 = vmatpush.bf16.msra.mxu0 0
    %1144 = vmatpush.bf16.msra.mxu0 0
    %1145 = vmatpush.bf16.msra.mxu0 0
    %1146 = vmatpush.bf16.msra.mxu0 0
    %1147 = vmatpush.bf16.msra.mxu0 %v1138
    %1148 = vmatmul.bf16.gmra.mxu0 %v1135
    %v1149 = vpop.f32.mrf.mxu0
    %v1150 = vadd.f32 0.0, %v1149
    %v1151 = vpop.f32.mrf.mxu0
    %1152 = vdwg.mxu0
    %v1153 = vpack.c.bf16 %v1150, %v1129
    %v1156 = vunpack.c.l.b16 %v862
    %v1157 = vunpack.c.l.b16 %v863
    %v1158 = vpack.c.b16 %v1157, %v1156
    %v1161 = vsel %vm178, %v1153, 0
    %1163 = vmatpush.bf16.msra.mxu0 0
    %1164 = vmatpush.bf16.msra.mxu0 0
    %1165 = vmatpush.bf16.msra.mxu0 0
    %1166 = vmatpush.bf16.msra.mxu0 0
    %1167 = vmatpush.bf16.msra.mxu0 0
    %1168 = vmatpush.bf16.msra.mxu0 0
    %1169 = vmatpush.bf16.msra.mxu0 0
    %1170 = vmatpush.bf16.msra.mxu0 %v1158
    %1171 = vmatmul.bf16.gmra.mxu0 %v1161
    %v1172 = vpop.f32.mrf.mxu0
    %v1173 = vadd.f32 0.0, %v1172
    %v1174 = vpop.f32.mrf.mxu0
    %v1175 = vadd.f32 0.0, %v1174
    %1176 = vdwg.mxu0
    %v1179 = vunpack.c.l.b16 %v860
    %v1180 = vunpack.c.l.b16 %v861
    %v1181 = vpack.c.b16 %v1180, %v1179
    %v1184 = vsel %vm178, %v1010, 0
    %1186 = vmatpush.bf16.msra.mxu0 0
    %1187 = vmatpush.bf16.msra.mxu0 0
    %1188 = vmatpush.bf16.msra.mxu0 0
    %1189 = vmatpush.bf16.msra.mxu0 0
    %1190 = vmatpush.bf16.msra.mxu0 0
    %1191 = vmatpush.bf16.msra.mxu0 0
    %1192 = vmatpush.bf16.msra.mxu0 0
    %1193 = vmatpush.bf16.msra.mxu0 %v1181
    %1194 = vmatmul.bf16.gmra.mxu0 %v1184
    %v1195 = vpop.f32.mrf.mxu0
    %v1196 = vadd.f32 %v1173, %v1195
    %v1197 = vpop.f32.mrf.mxu0
    %v1198 = vadd.f32 %v1175, %v1197
    %1199 = vdwg.mxu0
    %s1200 = scalar_lea.vmem %s7, 1
    %v1201 = vld [vmem:[%s1200] sm:$0x1]
    %v1203 = vperm.slane %v1201, 0
    %v1205 = vadd.f32 %v1196, %v1203
    %v1206 = vadd.f32 %v1198, %v1203
    %v1207 = vadd.f32 %v1205, %v817
    %v1208 = vadd.f32 %v1206, %v818
    %s1209 = scalar_lea.vmem %s8, 1
    %v1210 = vld [vmem:[%s1209] sm:$0x1]
    %s1211 = scalar_lea.vmem %s9, 1
    %v1212 = vld [vmem:[%s1211] sm:$0x1]
    %v1213 = vsel %vm67, %v1207, 0.0
    %1214 = vadd.xlane.f32.xlu0 %v1213
    %v1215 = vpop.xlane.xlu0 %1214
    %v1216 = vsel %vm67, %v1208, 0.0
    %1217 = vadd.xlane.f32.xlu0 %v1216
    %v1218 = vpop.xlane.xlu0 %1217
    %v1219 = vmul.f32 %v1215, %v80
    %v1220 = vmul.f32 %v1218, %v80
    %v1221 = vsub.f32 %v1207, %v1219
    %v1222 = vsub.f32 %v1208, %v1220
    %v1223 = vmul.f32 %v1221, %v1221
    %v1224 = vmul.f32 %v1222, %v1222
    %v1225 = vsel %vm67, %v1223, 0.0
    %1226 = vadd.xlane.f32.xlu0 %v1225
    %v1227 = vpop.xlane.xlu0 %1226
    %v1228 = vsel %vm67, %v1224, 0.0
    %1229 = vadd.xlane.f32.xlu0 %v1228
    %v1230 = vpop.xlane.xlu0 %1229
    %v1231 = vmul.f32 %v1227, %v80
    %v1232 = vmul.f32 %v1230, %v80
    %v1233 = vadd.f32 %v1231, 1e-12
    %v1234 = vadd.f32 %v1232, 1e-12
    %v1235 = vrsqrt.pop %v1233
    %v1236 = vmul.f32 %v1235, %v1233
    %v1237 = vmul.f32 %v1236, %v1235
    %v1238 = vmul.f32 0.5, %v1237
    %v1239 = vsub.f32 1.5, %v1238
    %v1240 = vmul.f32 %v1235, %v1239
    %vm1241 = vweird.f32 %v1233
    %vm1242 = vweird.f32 %v1235
    %vm1243 = vmor %vm1241, %vm1242
    %v1244 = vsel %vm1243, %v1235, %v1240
    %v1245 = vrsqrt.pop %v1234
    %v1246 = vmul.f32 %v1245, %v1234
    %v1247 = vmul.f32 %v1246, %v1245
    %v1248 = vmul.f32 0.5, %v1247
    %v1249 = vsub.f32 1.5, %v1248
    %v1250 = vmul.f32 %v1245, %v1249
    %vm1251 = vweird.f32 %v1234
    %vm1252 = vweird.f32 %v1245
    %vm1253 = vmor %vm1251, %vm1252
    %v1254 = vsel %vm1253, %v1245, %v1250
    %v1255 = vmul.f32 %v1221, %v1244
    %v1256 = vmul.f32 %v1222, %v1254
    %v1258 = vperm.slane %v1210, 0
    %v1260 = vmul.f32 %v1255, %v1258
    %v1261 = vmul.f32 %v1256, %v1258
    %v1263 = vperm.slane %v1212, 0
    %v1265 = vadd.f32 %v1260, %v1263
    %v1266 = vadd.f32 %v1261, %v1263
    %v1267 = vpack.c.bf16 %v1266, %v1265
    %s1268 = scalar_lea.vmem %s10, 16
    %v1269 = vld [vmem:[%s1268] sm:$0xf]
    %v1270 = vld [vmem:[%s1268 + $0x4] sm:$0xf]
    %v1271 = vld [vmem:[%s1268 + $0x8] sm:$0xf]
    %v1272 = vld [vmem:[%s1268 + $0xc] sm:$0xf]
    %s1273 = scalar_lea.vmem %s11, 1
    %v1274 = vld [vmem:[%s1273] sm:$0x1]
    %v1276 = vperm.slane %v1274, 0
    %v1282 = vunpack.c.l.b16 %v1269
    %v1283 = vunpack.c.l.b16 %v1270
    %v1284 = vunpack.c.l.b16 %v1271
    %v1285 = vunpack.c.l.b16 %v1272
    %v1286 = vpack.c.b16 %v1283, %v1282
    %v1287 = vpack.c.b16 %v1285, %v1284
    %v1291 = vsel %vm67, %v1267, 0
    %1293 = vmatpush.bf16.msra.mxu0 0
    %1294 = vmatpush.bf16.msra.mxu0 0
    %1295 = vmatpush.bf16.msra.mxu0 0
    %1296 = vmatpush.bf16.msra.mxu0 0
    %1297 = vmatpush.bf16.msra.mxu0 0
    %1298 = vmatpush.bf16.msra.mxu0 0
    %1299 = vmatpush.bf16.msra.mxu0 %v1287
    %1300 = vmatpush.bf16.msra.mxu0 %v1286
    %1301 = vmatmul.bf16.gmra.mxu0 %v1291
    %v1302 = vpop.f32.mrf.mxu0
    %v1303 = vadd.f32 %v1276, %v1302
    %v1304 = vpop.f32.mrf.mxu0
    %v1305 = vadd.f32 %v1276, %v1304
    %1306 = vdwg.mxu0
    %v1307 = vmul.f32 %v1303, 0.5
    %v1308 = vmul.f32 %v1305, 0.5
    %v1309 = vmul.f32 %v1303, 0.70710677
    %v1310 = vmul.f32 %v1305, 0.70710677
    %v1311 = vmul.f32 %v1309, %v1309
    %v1312 = vmin.f32 16.0, %v1311
    %v1313 = vmul.f32 %v1312, 2.1237322e-06
    %v1314 = vadd.f32 %v1313, 0.00028619796
    %v1315 = vmul.f32 %v1312, %v1314
    %v1316 = vadd.f32 %v1315, 0.0036580483
    %v1317 = vmul.f32 %v1312, %v1316
    %v1318 = vadd.f32 %v1317, 0.05243302
    %v1319 = vmul.f32 %v1312, %v1318
    %v1320 = vadd.f32 %v1319, 0.18741608
    %v1321 = vmul.f32 %v1312, %v1320
    %v1322 = vadd.f32 %v1321, 1.1283791
    %v1323 = vmul.f32 %v1309, %v1322
    %v1324 = vmul.f32 %v1312, 3.8918573e-05
    %v1325 = vadd.f32 %v1324, 0.001143296
    %v1326 = vmul.f32 %v1312, %v1325
    %v1327 = vadd.f32 %v1326, 0.014752088
    %v1328 = vmul.f32 %v1312, %v1327
    %v1329 = vadd.f32 %v1328, 0.112945676
    %v1330 = vmul.f32 %v1312, %v1329
    %v1331 = vadd.f32 %v1330, 0.4994258
    %v1332 = vmul.f32 %v1312, %v1331
    %v1333 = vadd.f32 %v1332, 1.0
    %v1334 = vrcp.pop %v1333
    %v1335 = vmul.f32 %v1333, %v1334
    %v1336 = vsub.f32 1.0, %v1335
    %v1337 = vmul.f32 %v1334, %v1336
    %v1338 = vadd.f32 %v1334, %v1337
    %vm1339 = vweird.f32 %v1333
    %vm1340 = vweird.f32 %v1334
    %vm1341 = vmor %vm1339, %vm1340
    %v1342 = vsel %vm1341, %v1334, %v1338
    %v1343 = vand.u32 2147483647, %v1333
    %vm1344 = vcmp.eq.f32.partialorder %v1343, 8.507059e+37
    %v1345 = vand.u32 %v1333, 2147483648
    %v1346 = vor.u32 1.1754944e-38, %v1345
    %v1347 = vsel %vm1344, %v1346, %v1342
    %v1348 = vmul.f32 %v1323, %v1347
    %v1349 = vmin.f32 %v1348, 1.0
    %v1350 = vmax.f32 %v1349, -1.0
    %v1351 = vmul.f32 %v1310, %v1310
    %v1352 = vmin.f32 16.0, %v1351
    %v1353 = vmul.f32 %v1352, 2.1237322e-06
    %v1354 = vadd.f32 %v1353, 0.00028619796
    %v1355 = vmul.f32 %v1352, %v1354
    %v1356 = vadd.f32 %v1355, 0.0036580483
    %v1357 = vmul.f32 %v1352, %v1356
    %v1358 = vadd.f32 %v1357, 0.05243302
    %v1359 = vmul.f32 %v1352, %v1358
    %v1360 = vadd.f32 %v1359, 0.18741608
    %v1361 = vmul.f32 %v1352, %v1360
    %v1362 = vadd.f32 %v1361, 1.1283791
    %v1363 = vmul.f32 %v1310, %v1362
    %v1364 = vmul.f32 %v1352, 3.8918573e-05
    %v1365 = vadd.f32 %v1364, 0.001143296
    %v1366 = vmul.f32 %v1352, %v1365
    %v1367 = vadd.f32 %v1366, 0.014752088
    %v1368 = vmul.f32 %v1352, %v1367
    %v1369 = vadd.f32 %v1368, 0.112945676
    %v1370 = vmul.f32 %v1352, %v1369
    %v1371 = vadd.f32 %v1370, 0.4994258
    %v1372 = vmul.f32 %v1352, %v1371
    %v1373 = vadd.f32 %v1372, 1.0
    %v1374 = vrcp.pop %v1373
    %v1375 = vmul.f32 %v1373, %v1374
    %v1376 = vsub.f32 1.0, %v1375
    %v1377 = vmul.f32 %v1374, %v1376
    %v1378 = vadd.f32 %v1374, %v1377
    %vm1379 = vweird.f32 %v1373
    %vm1380 = vweird.f32 %v1374
    %vm1381 = vmor %vm1379, %vm1380
    %v1382 = vsel %vm1381, %v1374, %v1378
    %v1383 = vand.u32 2147483647, %v1373
    %vm1384 = vcmp.eq.f32.partialorder %v1383, 8.507059e+37
    %v1385 = vand.u32 %v1373, 2147483648
    %v1386 = vor.u32 1.1754944e-38, %v1385
    %v1387 = vsel %vm1384, %v1386, %v1382
    %v1388 = vmul.f32 %v1363, %v1387
    %v1389 = vmin.f32 %v1388, 1.0
    %v1390 = vmax.f32 %v1389, -1.0
    %v1391 = vadd.f32 %v1350, 1.0
    %v1392 = vadd.f32 %v1390, 1.0
    %v1393 = vmul.f32 %v1307, %v1391
    %v1394 = vmul.f32 %v1308, %v1392
    %v1395 = vpack.c.bf16 %v1394, %v1393
    %s1396 = scalar_lea.vmem %s12, 32
    %v1397 = vld [vmem:[%s1396] sm:$0xf]
    %v1398 = vld [vmem:[%s1396 + $0x4] sm:$0xf]
    %v1399 = vld [vmem:[%s1396 + $0x8] sm:$0xf]
    %v1400 = vld [vmem:[%s1396 + $0xc] sm:$0xf]
    %v1401 = vld [vmem:[%s1396 + $0x10] sm:$0xf]
    %v1402 = vld [vmem:[%s1396 + $0x14] sm:$0xf]
    %v1403 = vld [vmem:[%s1396 + $0x18] sm:$0xf]
    %v1404 = vld [vmem:[%s1396 + $0x1c] sm:$0xf]
    %s1405 = scalar_lea.vmem %s13, 1
    %v1406 = vld [vmem:[%s1405] sm:$0x1]
    %v1408 = vperm.slane %v1406, 0
    %v1418 = vunpack.c.l.b16 %v1397
    %v1419 = vunpack.c.l.b16 %v1398
    %v1420 = vunpack.c.l.b16 %v1399
    %v1421 = vunpack.c.l.b16 %v1400
    %v1422 = vunpack.c.l.b16 %v1401
    %v1423 = vunpack.c.l.b16 %v1402
    %v1424 = vunpack.c.l.b16 %v1403
    %v1425 = vunpack.c.l.b16 %v1404
    %v1426 = vpack.c.b16 %v1419, %v1418
    %v1427 = vpack.c.b16 %v1421, %v1420
    %v1428 = vpack.c.b16 %v1423, %v1422
    %v1429 = vpack.c.b16 %v1425, %v1424
    %v1435 = vsel %vm743, %v1395, 0
    %1437 = vmatpush.bf16.msra.mxu0 0
    %1438 = vmatpush.bf16.msra.mxu0 0
    %1439 = vmatpush.bf16.msra.mxu0 0
    %1440 = vmatpush.bf16.msra.mxu0 0
    %1441 = vmatpush.bf16.msra.mxu0 %v1429
    %1442 = vmatpush.bf16.msra.mxu0 %v1428
    %1443 = vmatpush.bf16.msra.mxu0 %v1427
    %1444 = vmatpush.bf16.msra.mxu0 %v1426
    %1445 = vmatmul.bf16.gmra.mxu0 %v1435
    %v1446 = vpop.f32.mrf.mxu0
    %v1447 = vadd.f32 %v1408, %v1446
    %v1448 = vpop.f32.mrf.mxu0
    %v1449 = vadd.f32 %v1408, %v1448
    %1450 = vdwg.mxu0
    %v1451 = vadd.f32 %v1447, %v1265
    %v1452 = vadd.f32 %v1449, %v1266
    %s1453 = scalar_lea.vmem %s14, 1
    %v1454 = vld [vmem:[%s1453] sm:$0x1]
    %s1455 = scalar_lea.vmem %s15, 1
    %v1456 = vld [vmem:[%s1455] sm:$0x1]
    %v1457 = vsel %vm67, %v1451, 0.0
    %1458 = vadd.xlane.f32.xlu0 %v1457
    %v1459 = vpop.xlane.xlu0 %1458
    %v1460 = vsel %vm67, %v1452, 0.0
    %1461 = vadd.xlane.f32.xlu0 %v1460
    %v1462 = vpop.xlane.xlu0 %1461
    %v1463 = vmul.f32 %v1459, %v80
    %v1464 = vmul.f32 %v1462, %v80
    %v1465 = vsub.f32 %v1451, %v1463
    %v1466 = vsub.f32 %v1452, %v1464
    %v1467 = vmul.f32 %v1465, %v1465
    %v1468 = vmul.f32 %v1466, %v1466
    %v1469 = vsel %vm67, %v1467, 0.0
    %1470 = vadd.xlane.f32.xlu0 %v1469
    %v1471 = vpop.xlane.xlu0 %1470
    %v1472 = vsel %vm67, %v1468, 0.0
    %1473 = vadd.xlane.f32.xlu0 %v1472
    %v1474 = vpop.xlane.xlu0 %1473
    %v1475 = vmul.f32 %v1471, %v80
    %v1476 = vmul.f32 %v1474, %v80
    %v1477 = vadd.f32 %v1475, 1e-12
    %v1478 = vadd.f32 %v1476, 1e-12
    %v1479 = vrsqrt.pop %v1477
    %v1480 = vmul.f32 %v1479, %v1477
    %v1481 = vmul.f32 %v1480, %v1479
    %v1482 = vmul.f32 0.5, %v1481
    %v1483 = vsub.f32 1.5, %v1482
    %v1484 = vmul.f32 %v1479, %v1483
    %vm1485 = vweird.f32 %v1477
    %vm1486 = vweird.f32 %v1479
    %vm1487 = vmor %vm1485, %vm1486
    %v1488 = vsel %vm1487, %v1479, %v1484
    %v1489 = vrsqrt.pop %v1478
    %v1490 = vmul.f32 %v1489, %v1478
    %v1491 = vmul.f32 %v1490, %v1489
    %v1492 = vmul.f32 0.5, %v1491
    %v1493 = vsub.f32 1.5, %v1492
    %v1494 = vmul.f32 %v1489, %v1493
    %vm1495 = vweird.f32 %v1478
    %vm1496 = vweird.f32 %v1489
    %vm1497 = vmor %vm1495, %vm1496
    %v1498 = vsel %vm1497, %v1489, %v1494
    %v1499 = vmul.f32 %v1465, %v1488
    %v1500 = vmul.f32 %v1466, %v1498
    %v1502 = vperm.slane %v1454, 0
    %v1504 = vmul.f32 %v1499, %v1502
    %v1505 = vmul.f32 %v1500, %v1502
    %v1507 = vperm.slane %v1456, 0
    %v1509 = vadd.f32 %v1504, %v1507
    %v1510 = vadd.f32 %v1505, %v1507
    %v1511 = vpack.c.bf16 %v1509, %v1509
    %v1512 = vld [vmem:[%s16] sm:$0xf]
    %v1513 = vld [vmem:[%s16 + $0x4] sm:$0xf]
    %v1514 = vld [vmem:[%s16 + $0x8] sm:$0xf]
    %v1515 = vld [vmem:[%s16 + $0xc] sm:$0xf]
    %v1516 = vld [vmem:[%s17] sm:$0x1]
    %v1521 = vunpack.c.l.b16 %v1512
    %v1522 = vunpack.c.l.b16 %v1513
    %v1523 = vunpack.c.l.b16 %v1514
    %v1524 = vunpack.c.l.b16 %v1515
    %v1525 = vpack.c.b16 %v1522, %v1521
    %v1526 = vpack.c.b16 %v1524, %v1523
    %v1530 = vsel %vm67, %v1511, 0
    %1532 = vmatpush.bf16.msra.mxu0 0
    %1533 = vmatpush.bf16.msra.mxu0 0
    %1534 = vmatpush.bf16.msra.mxu0 0
    %1535 = vmatpush.bf16.msra.mxu0 0
    %1536 = vmatpush.bf16.msra.mxu0 0
    %1537 = vmatpush.bf16.msra.mxu0 0
    %1538 = vmatpush.bf16.msra.mxu0 %v1526
    %1539 = vmatpush.bf16.msra.mxu0 %v1525
    %1540 = vmatmul.bf16.gmra.mxu0 %v1530
    %v1541 = vpop.f32.mrf.mxu0
    %v1542 = vadd.f32 %v1516, %v1541
    %v1543 = vpop.f32.mrf.mxu0
    %1544 = vdwg.mxu0
    %v1545 = vtanh.pop %v1542
    %vm1546 = vcmask 253952
    %1547 = vst.msk [vmem:[#allocation2] sm:$0x1] %vm1546, %v1545
    %v1548 = vpack.c.bf16 %v1510, %v1510
    %v1549 = vld [vmem:[%s16] sm:$0xf]
    %v1550 = vld [vmem:[%s16 + $0x4] sm:$0xf]
    %v1551 = vld [vmem:[%s16 + $0x8] sm:$0xf]
    %v1552 = vld [vmem:[%s16 + $0xc] sm:$0xf]
    %v1553 = vld [vmem:[%s17] sm:$0x1]
    %v1558 = vunpack.c.l.b16 %v1549
    %v1559 = vunpack.c.l.b16 %v1550
    %v1560 = vunpack.c.l.b16 %v1551
    %v1561 = vunpack.c.l.b16 %v1552
    %v1562 = vpack.c.b16 %v1559, %v1558
    %v1563 = vpack.c.b16 %v1561, %v1560
    %v1567 = vsel %vm67, %v1548, 0
    %1569 = vmatpush.bf16.msra.mxu0 0
    %1570 = vmatpush.bf16.msra.mxu0 0
    %1571 = vmatpush.bf16.msra.mxu0 0
    %1572 = vmatpush.bf16.msra.mxu0 0
    %1573 = vmatpush.bf16.msra.mxu0 0
    %1574 = vmatpush.bf16.msra.mxu0 0
    %1575 = vmatpush.bf16.msra.mxu0 %v1563
    %1576 = vmatpush.bf16.msra.mxu0 %v1562
    %1577 = vmatmul.bf16.gmra.mxu0 %v1567
    %v1578 = vpop.f32.mrf.mxu0
    %v1579 = vadd.f32 %v1553, %v1578
    %v1580 = vpop.f32.mrf.mxu0
    %1581 = vdwg.mxu0
    %v1582 = vtanh.pop %v1579
    %1583 = vst.msk [vmem:[#allocation2 + $0x1] sm:$0x1] %vm1546, %v1582
    // Predicated region
    $region74: #{bert_pooler_output.1} parent=1 // pred_check
      _
    $region75: #{bert_pooler_output.1} parent=1 // pred_check_branch
      %1585 = sbr.rel (0) target = $region77
    $region76: #{bert_pooler_output.1} parent=1 // pred_region
      %1587 = vsyncadd [#allocation3], 0
      %s1589 = sshll.u32 [#allocation2], 4
      %s1590 = int_to_ptr.vmem [resolvable:$true] %s1589
      %s1591 = sshll.u32 %s18, 4
      %s1592 = int_to_ptr.hbm [resolvable:$true] %s1591
      %1594 = dma.vmem_to_hbm [thread:$0]  %s1590, 32, %s1592, [#allocation3]
    $region77: #{bert_pooler_output.1} parent=1 // pred_fallthru
      _
    // Predicated region
    $region78: #{bert_pooler_output.1} parent=1 // pred_check
      _
    $region79: #{bert_pooler_output.1} parent=1 // pred_check_branch
      %1596 = sbr.rel (0) target = $region81
    $region80: #{bert_pooler_output.1} parent=1 // pred_region
      %1598 = dma.done [#allocation3], 32
    $region81: #{bert_pooler_output.1} parent=1 // pred_fallthru
      _
    %1599 = vsyncpa [#allocation3], 1

</llo_original>
